<compile_context>
chip_gen: v7x
topology: tpu7x:2x2x1
jax: 0.10.0
libtpu: 0.0.40
codegen_flags: <defaults>
</compile_context>

<pallas_src>
import functools

import numpy as np
import jax
import jax.numpy as jnp
from jax import lax
from jax.experimental import pallas as pl
from jax.experimental.pallas import tpu as pltpu


_EPS = 1e-5  # nn.GroupNorm default eps


def _gelu_exact(x):
    # PyTorch nn.GELU default ('none' approximation) == erf-based GELU.
    return 0.5 * x * (1.0 + lax.erf(x * np.float32(2.0 ** -0.5)))


def _double_conv_kernel(x_ref, w1_ref, g1_ref, b1_ref, w2_ref, g2_ref, b2_ref,
                        out_ref, s1_ref, p1_ref, s2_ref, p2_ref,
                        *, H, W, eps, residual):
    """One batch element of DoubleConv, fully fused in VMEM.

    x_ref  : (1, Cin, H*W)            input sample, channel-first, flat spatial
    w*_ref : (Cout, 9*Cin)            im2col-ordered conv weights
    g*_ref : (C, 1), b*_ref : (C, 1)  GroupNorm affine params
    out_ref: (1, Cout, H*W)
    s*_ref : (C, H*W + 2W + 2)        halo-padded image scratch (VMEM)
    p*_ref : (9*C, H*W)               im2col patch scratch (VMEM)
    """
    f32 = jnp.float32
    HW = H * W
    pad = W + 1                        # flattened 1-pixel halo on each side
    cdt = s1_ref.dtype                 # MXU operand dtype (f32 or bf16)

    # Scratch persists across grid steps; only the halo columns need zeros and
    # they are never overwritten, so init once on the first grid step.
    @pl.when(pl.program_id(0) == 0)
    def _init_halo():
        s1_ref[...] = jnp.zeros_like(s1_ref)
        s2_ref[...] = jnp.zeros_like(s2_ref)

    # x-boundary masks (flattened halo makes the y-boundaries free); hoisted
    # once and shared by both conv layers.
    xx = lax.broadcasted_iota(jnp.int32, (1, HW), 1) % W
    x_mask = {-1: xx >= 1, 0: None, 1: xx < (W - 1)}

    def im2col(s_ref, p_ref, cin):
        # Patch rows [k*cin, (k+1)*cin) hold the image shifted by tap k=(ky,kx).
        for ky in range(3):
            for kx in range(3):
                dy, dx = ky - 1, kx - 1
                # Zero-cost ref slice into the halo-padded buffer (static start).
                patch = s_ref[:, pl.ds(pad + dy * W + dx, HW)]     # (cin, HW)
                if x_mask[dx] is not None:
                    patch = jnp.where(x_mask[dx], patch, jnp.zeros_like(patch))
                p_ref[pl.ds((ky * 3 + kx) * cin, cin), :] = patch  # lane-dense store

    def conv_gn(s_ref, p_ref, w_ref, g_ref, b_ref, cin):
        im2col(s_ref, p_ref, cin)
        # Single MXU matmul per layer: (Cout, 9*Cin) @ (9*Cin, HW), f32 accum.
        z = jnp.dot(w_ref[...], p_ref[...], preferred_element_type=f32)
        # GroupNorm(num_groups=1): stats over all of (C, H, W), single pass.
        cnt = z.shape[0] * z.shape[1]
        mean = jnp.sum(z) / cnt
        var = jnp.sum(z * z) / cnt - mean * mean                   # biased (PyTorch)
        inv = lax.rsqrt(var + eps)
        gamma = g_ref[...].astype(f32)                             # (C, 1)
        beta = b_ref[...].astype(f32)                              # (C, 1)
        return (z - mean) * (inv * gamma) + beta

    x = x_ref[0]                                                   # (Cin, HW)
    s1_ref[:, pl.ds(pad, HW)] = x.astype(cdt)                      # interior only
    h = _gelu_exact(conv_gn(s1_ref, p1_ref, w1_ref, g1_ref, b1_ref, x.shape[0]))
    s2_ref[:, pl.ds(pad, HW)] = h.astype(cdt)                      # stays in VMEM
    y = conv_gn(s2_ref, p2_ref, w2_ref, g2_ref, b2_ref, h.shape[0])
    if residual:
        y = _gelu_exact(x.astype(f32) + y)
    out_ref[0] = y.astype(out_ref.dtype)                           # lane-dense store


@functools.partial(jax.jit, static_argnames=("residual", "compute_dtype"))
def double_conv(x, params, residual=False, compute_dtype=jnp.float32):
    """Fused DoubleConv forward.

    x      : (N, C_in, H, W)  -- NCHW, the PyTorch layout.
    params : w1 (3,3,C_mid,C_in), w2 (3,3,C_out,C_mid)   (= OIHW.permute(2,3,0,1))
             g1,b1 (C_mid,), g2,b2 (C_out,)
    compute_dtype: MXU operand dtype (jnp.float32 or jnp.bfloat16); GroupNorm,
             GELU and accumulation stay in fp32 either way.
    """
    N, Cin, H, W = x.shape
    w1, w2 = params["w1"], params["w2"]
    Cmid, Cout = w1.shape[2], w2.shape[2]
    if residual and Cin != Cout:
        raise ValueError("residual=True requires in_channels == out_channels")
    HW = H * W
    HWp = HW + 2 * W + 2                    # flattened 1-pixel halo

    x_flat = x.reshape(N, Cin, HW)          # free reshape: NCHW is contiguous
    # (3,3,O,I) -> (O, 9*I): row order = tap-major, channel-minor, matching im2col.
    w1m = jnp.transpose(w1, (2, 0, 1, 3)).reshape(Cmid, 9 * Cin).astype(compute_dtype)
    w2m = jnp.transpose(w2, (2, 0, 1, 3)).reshape(Cout, 9 * Cmid).astype(compute_dtype)
    g1 = params["g1"].reshape(Cmid, 1).astype(jnp.float32)
    b1 = params["b1"].reshape(Cmid, 1).astype(jnp.float32)
    g2 = params["g2"].reshape(Cout, 1).astype(jnp.float32)
    b2 = params["b2"].reshape(Cout, 1).astype(jnp.float32)

    kernel = functools.partial(_double_conv_kernel, H=H, W=W, eps=_EPS,
                               residual=residual)

    # Explicit VMEM budget instead of the default scoped limit (32 MiB v6e /
    # 16 MiB v5e); clamp to 64 MiB so it is also valid on v7x.
    act_b = x.dtype.itemsize
    cdt_b = jnp.dtype(compute_dtype).itemsize
    per_step = (2 * (Cin + Cout) * HW * act_b                     # dbl-buffered in/out
                + 2 * 9 * (Cin * Cmid + Cmid * Cout) * cdt_b      # weight matrices
                + (Cin + Cmid) * HWp * cdt_b                      # halo-padded scratch
                + 9 * (Cin + Cmid) * HW * cdt_b                   # im2col scratch
                + 16 * max(Cin, Cmid, Cout) * HW * 4)             # live f32 temporaries
    vmem_limit = int(min(64 * 2 ** 20, max(16 * 2 ** 20, 2 * per_step)))

    out = pl.pallas_call(
        kernel,
        out_shape=jax.ShapeDtypeStruct((N, Cout, HW), x.dtype),
        grid=(N,),
        in_specs=[
            pl.BlockSpec((1, Cin, HW), lambda n: (n, 0, 0)),
            pl.BlockSpec((Cmid, 9 * Cin), lambda n: (0, 0)),
            pl.BlockSpec((Cmid, 1), lambda n: (0, 0)),
            pl.BlockSpec((Cmid, 1), lambda n: (0, 0)),
            pl.BlockSpec((Cout, 9 * Cmid), lambda n: (0, 0)),
            pl.BlockSpec((Cout, 1), lambda n: (0, 0)),
            pl.BlockSpec((Cout, 1), lambda n: (0, 0)),
        ],
        out_specs=pl.BlockSpec((1, Cout, HW), lambda n: (n, 0, 0)),
        scratch_shapes=[
            pltpu.VMEM((Cin, HWp), compute_dtype),      # halo-padded layer-1 input
            pltpu.VMEM((9 * Cin, HW), compute_dtype),   # layer-1 im2col patches
            pltpu.VMEM((Cmid, HWp), compute_dtype),     # halo-padded layer-2 input (h)
            pltpu.VMEM((9 * Cmid, HW), compute_dtype),  # layer-2 im2col patches
        ],
        compiler_params=pltpu.CompilerParams(
            dimension_semantics=("parallel",),
            vmem_limit_bytes=vmem_limit),
    )(x_flat, w1m, g1, b1, w2m, g2, b2)
    return out.reshape(N, Cout, H, W)


# ---------------- plain-JAX reference (verification only) ----------------
def _ref_double_conv(x, params, residual):
    def conv(z, w):  # z: NCHW, w: (kh, kw, O, I)
        return lax.conv_general_dilated(
            z, w, (1, 1), ((1, 1), (1, 1)),
            dimension_numbers=("NCHW", "HWOI", "NCHW"))

    def gn(z, g, b, eps=_EPS):
        mean = jnp.mean(z, axis=(1, 2, 3), keepdims=True)
        var = jnp.mean((z - mean) ** 2, axis=(1, 2, 3), keepdims=True)
        zn = (z - mean) * lax.rsqrt(var + eps)
        return zn * g.reshape(1, -1, 1, 1) + b.reshape(1, -1, 1, 1)

    h = _gelu_exact(gn(conv(x, params["w1"]), params["g1"], params["b1"]))
    y = gn(conv(h, params["w2"]), params["g2"], params["b2"])
    if residual:
        y = _gelu_exact(x + y)
    return y


if __name__ == "__main__":
    # batch=2, in_channels=4, mid_channels=8, out_channels=4, spatial=16x16.
    # residual=True requires in_channels == out_channels (as in the PyTorch module).
    N, H, W = 2, 16, 16
    C_IN, C_MID, C_OUT = 4, 8, 4
    residual = True

    key = jax.random.PRNGKey(0)
    kx, kw1, kw2, kg1, kb1, kg2, kb2 = jax.random.split(key, 7)

    x = jax.random.normal(kx, (N, C_IN, H, W), jnp.float32)     # NCHW (PyTorch layout)

    params = {
        # conv weights stored as (kh, kw, Cout, Cin) == PyTorch OIHW.permute(2,3,0,1)
        "w1": 0.1 * jax.random.normal(kw1, (3, 3, C_MID, C_IN), jnp.float32),
        "w2": 0.1 * jax.random.normal(kw2, (3, 3, C_OUT, C_MID), jnp.float32),
        # GroupNorm affine params (PyTorch init is ones/zeros; perturb to exercise them).
        "g1": 1.0 + 0.1 * jax.random.normal(kg1, (C_MID,), jnp.float32),
        "b1": 0.1 * jax.random.normal(kb1, (C_MID,), jnp.float32),
        "g2": 1.0 + 0.1 * jax.random.normal(kg2, (C_OUT,), jnp.float32),
        "b2": 0.1 * jax.random.normal(kb2, (C_OUT,), jnp.float32),
    }

    # fp32 MXU operands: tight check against the XLA reference.
    out = jax.block_until_ready(double_conv(x, params, residual=residual))
    ref = jax.block_until_ready(_ref_double_conv(x, params, residual))
    np.testing.assert_allclose(np.asarray(out), np.asarray(ref), rtol=1e-4, atol=1e-4)

    # Non-residual path.
    out_nr = jax.block_until_ready(double_conv(x, params, residual=False))
    ref_nr = jax.block_until_ready(_ref_double_conv(x, params, residual=False))
    np.testing.assert_allclose(np.asarray(out_nr), np.asarray(ref_nr),
                               rtol=1e-4, atol=1e-4)

    # bf16 MXU operands (v6e/v7x fast path), fp32 accumulation + epilogue.
    out_bf = jax.block_until_ready(
        double_conv(x, params, residual=residual, compute_dtype=jnp.bfloat16))
    np.testing.assert_allclose(np.asarray(out_bf), np.asarray(ref),
                               rtol=5e-2, atol=7.5e-2)

    print("KERNEL_OK")
</pallas_src>

<mosaic_0001>
module attributes {stable_mosaic.version = 11 : i64} {
  func.func @_double_conv_kernel(%arg0: i32, %arg1: memref<1x4x256xf32, #tpu.memory_space<vmem>>, %arg2: memref<8x36xf32, #tpu.memory_space<vmem>>, %arg3: memref<8x1xf32, #tpu.memory_space<vmem>>, %arg4: memref<8x1xf32, #tpu.memory_space<vmem>>, %arg5: memref<4x72xf32, #tpu.memory_space<vmem>>, %arg6: memref<4x1xf32, #tpu.memory_space<vmem>>, %arg7: memref<4x1xf32, #tpu.memory_space<vmem>>, %arg8: memref<1x4x256xf32, #tpu.memory_space<vmem>>, %arg9: memref<4x290xf32, #tpu.memory_space<vmem>>, %arg10: memref<36x256xf32, #tpu.memory_space<vmem>>, %arg11: memref<8x290xf32, #tpu.memory_space<vmem>>, %arg12: memref<72x256xf32, #tpu.memory_space<vmem>>) attributes {dimension_semantics = [#tpu.dimension_semantics<parallel>], iteration_bounds = array<i64: 2>, scalar_prefetch = 0 : i64, scratch_operands = 4 : i64, tpu.core_type = #tpu.core_type<tc>, window_params = [{transform_indices = @transform_0, window_bounds = array<i64: 1, 4, 256>}, {pipeline_mode = #tpu.pipeline_mode<synchronous>, transform_indices = @transform_1, window_bounds = array<i64: 8, 36>}, {pipeline_mode = #tpu.pipeline_mode<synchronous>, transform_indices = @transform_2, window_bounds = array<i64: 8, 1>}, {pipeline_mode = #tpu.pipeline_mode<synchronous>, transform_indices = @transform_3, window_bounds = array<i64: 8, 1>}, {pipeline_mode = #tpu.pipeline_mode<synchronous>, transform_indices = @transform_4, window_bounds = array<i64: 4, 72>}, {pipeline_mode = #tpu.pipeline_mode<synchronous>, transform_indices = @transform_5, window_bounds = array<i64: 4, 1>}, {pipeline_mode = #tpu.pipeline_mode<synchronous>, transform_indices = @transform_6, window_bounds = array<i64: 4, 1>}, {transform_indices = @transform_7, window_bounds = array<i64: 1, 4, 256>}]} {
    %c0_i32 = arith.constant 0 : i32
    %0 = arith.cmpi eq, %arg0, %c0_i32 : i32
    %1 = arith.extui %0 : i1 to i32
    %c0_i32_0 = arith.constant 0 : i32
    %2 = arith.cmpi ne, %1, %c0_i32_0 : i32
    scf.if %2 {
      %cst_114 = arith.constant 0.000000e+00 : f32
      %188 = vector.broadcast %cst_114 : f32 to vector<4x290xf32>
      %c0_115 = arith.constant 0 : index
      %c0_116 = arith.constant 0 : index
      %189 = vector.load %arg9[%c0_115, %c0_116] : memref<4x290xf32, #tpu.memory_space<vmem>>, vector<4x290xf32>
      tpu.vector_store %arg9[%c0_115, %c0_116], %188 {strides = array<i32>} : memref<4x290xf32, #tpu.memory_space<vmem>>, vector<4x290xf32>,
      %cst_117 = arith.constant 0.000000e+00 : f32
      %190 = vector.broadcast %cst_117 : f32 to vector<8x290xf32>
      %c0_118 = arith.constant 0 : index
      %c0_119 = arith.constant 0 : index
      %191 = vector.load %arg11[%c0_118, %c0_119] : memref<8x290xf32, #tpu.memory_space<vmem>>, vector<8x290xf32>
      tpu.vector_store %arg11[%c0_118, %c0_119], %190 {strides = array<i32>} : memref<8x290xf32, #tpu.memory_space<vmem>>, vector<8x290xf32>,
    } else {
    }
    %3 = tpu.iota {dimensions = array<i32: 1>} : vector<1x256xi32>
    %c16_i32 = arith.constant 16 : i32
    %c0_i32_1 = arith.constant 0 : i32
    %4 = arith.cmpi eq, %c16_i32, %c0_i32_1 : i32
    %c1_i32 = arith.constant 1 : i32
    %5 = arith.select %4, %c1_i32, %c16_i32 : i32
    %6 = vector.broadcast %5 : i32 to vector<1x256xi32>
    %7 = arith.remsi %3, %6 : vector<1x256xi32>
    %c0_i32_2 = arith.constant 0 : i32
    %8 = vector.broadcast %c0_i32_2 : i32 to vector<1x256xi32>
    %9 = arith.cmpi ne, %7, %8 : vector<1x256xi32>
    %c0_i32_3 = arith.constant 0 : i32
    %10 = vector.broadcast %c0_i32_3 : i32 to vector<1x256xi32>
    %11 = arith.cmpi slt, %7, %10 : vector<1x256xi32>
    %c0_i32_4 = arith.constant 0 : i32
    %12 = arith.cmpi slt, %5, %c0_i32_4 : i32
    %13 = vector.broadcast %12 : i1 to vector<1x256xi1>
    %14 = vector.broadcast %13 : vector<1x256xi1> to vector<1x256xi1>
    %15 = arith.xori %11, %14 : vector<1x256xi1>
    %16 = arith.andi %15, %9 : vector<1x256xi1>
    %17 = vector.broadcast %5 : i32 to vector<1x256xi32>
    %18 = arith.addi %7, %17 : vector<1x256xi32>
    %19 = arith.select %16, %18, %7 : vector<1x256xi1>, vector<1x256xi32>
    %c1_i32_5 = arith.constant 1 : i32
    %20 = vector.broadcast %c1_i32_5 : i32 to vector<1x256xi32>
    %21 = arith.cmpi sge, %19, %20 : vector<1x256xi32>
    %c15_i32 = arith.constant 15 : i32
    %22 = vector.broadcast %c15_i32 : i32 to vector<1x256xi32>
    %23 = arith.cmpi slt, %19, %22 : vector<1x256xi32>
    %c0 = arith.constant 0 : index
    %c0_6 = arith.constant 0 : index
    %c0_7 = arith.constant 0 : index
    %24 = vector.load %arg1[%c0, %c0_6, %c0_7] : memref<1x4x256xf32, #tpu.memory_space<vmem>>, vector<1x4x256xf32>
    %25 = vector.shape_cast %24 : vector<1x4x256xf32> to vector<4x256xf32>
    %c0_8 = arith.constant 0 : index
    %c17 = arith.constant 17 : index
    %26 = vector.load %arg9[%c0_8, %c17] : memref<4x290xf32, #tpu.memory_space<vmem>>, vector<4x256xf32>
    tpu.vector_store %arg9[%c0_8, %c17], %25 {strides = array<i32>} : memref<4x290xf32, #tpu.memory_space<vmem>>, vector<4x256xf32>,
    %c0_9 = arith.constant 0 : index
    %c0_10 = arith.constant 0 : index
    %27 = vector.load %arg9[%c0_9, %c0_10] : memref<4x290xf32, #tpu.memory_space<vmem>>, vector<4x256xf32>
    %cst = arith.constant 0.000000e+00 : f32
    %28 = vector.broadcast %cst : f32 to vector<4x256xf32>
    %29 = vector.shape_cast %21 : vector<1x256xi1> to vector<1x256xi1>
    %30 = vector.broadcast %29 : vector<1x256xi1> to vector<4x256xi1>
    %31 = arith.select %30, %27, %28 : vector<4x256xi1>, vector<4x256xf32>
    %c0_11 = arith.constant 0 : index
    %c0_12 = arith.constant 0 : index
    %32 = vector.load %arg10[%c0_11, %c0_12] : memref<36x256xf32, #tpu.memory_space<vmem>>, vector<4x256xf32>
    tpu.vector_store %arg10[%c0_11, %c0_12], %31 {strides = array<i32>} : memref<36x256xf32, #tpu.memory_space<vmem>>, vector<4x256xf32>,
    %c0_13 = arith.constant 0 : index
    %c1 = arith.constant 1 : index
    %33 = vector.load %arg9[%c0_13, %c1] : memref<4x290xf32, #tpu.memory_space<vmem>>, vector<4x256xf32>
    %c4 = arith.constant 4 : index
    %c0_14 = arith.constant 0 : index
    %34 = vector.load %arg10[%c4, %c0_14] : memref<36x256xf32, #tpu.memory_space<vmem>>, vector<4x256xf32>
    tpu.vector_store %arg10[%c4, %c0_14], %33 {strides = array<i32>} : memref<36x256xf32, #tpu.memory_space<vmem>>, vector<4x256xf32>,
    %c0_15 = arith.constant 0 : index
    %c2 = arith.constant 2 : index
    %35 = vector.load %arg9[%c0_15, %c2] : memref<4x290xf32, #tpu.memory_space<vmem>>, vector<4x256xf32>
    %cst_16 = arith.constant 0.000000e+00 : f32
    %36 = vector.broadcast %cst_16 : f32 to vector<4x256xf32>
    %37 = vector.shape_cast %23 : vector<1x256xi1> to vector<1x256xi1>
    %38 = vector.broadcast %37 : vector<1x256xi1> to vector<4x256xi1>
    %39 = arith.select %38, %35, %36 : vector<4x256xi1>, vector<4x256xf32>
    %c8 = arith.constant 8 : index
    %c0_17 = arith.constant 0 : index
    %40 = vector.load %arg10[%c8, %c0_17] : memref<36x256xf32, #tpu.memory_space<vmem>>, vector<4x256xf32>
    tpu.vector_store %arg10[%c8, %c0_17], %39 {strides = array<i32>} : memref<36x256xf32, #tpu.memory_space<vmem>>, vector<4x256xf32>,
    %c0_18 = arith.constant 0 : index
    %c16 = arith.constant 16 : index
    %41 = vector.load %arg9[%c0_18, %c16] : memref<4x290xf32, #tpu.memory_space<vmem>>, vector<4x256xf32>
    %cst_19 = arith.constant 0.000000e+00 : f32
    %42 = vector.broadcast %cst_19 : f32 to vector<4x256xf32>
    %43 = vector.shape_cast %21 : vector<1x256xi1> to vector<1x256xi1>
    %44 = vector.broadcast %43 : vector<1x256xi1> to vector<4x256xi1>
    %45 = arith.select %44, %41, %42 : vector<4x256xi1>, vector<4x256xf32>
    %c12 = arith.constant 12 : index
    %c0_20 = arith.constant 0 : index
    %46 = vector.load %arg10[%c12, %c0_20] : memref<36x256xf32, #tpu.memory_space<vmem>>, vector<4x256xf32>
    tpu.vector_store %arg10[%c12, %c0_20], %45 {strides = array<i32>} : memref<36x256xf32, #tpu.memory_space<vmem>>, vector<4x256xf32>,
    %c0_21 = arith.constant 0 : index
    %c17_22 = arith.constant 17 : index
    %47 = vector.load %arg9[%c0_21, %c17_22] : memref<4x290xf32, #tpu.memory_space<vmem>>, vector<4x256xf32>
    %c16_23 = arith.constant 16 : index
    %c0_24 = arith.constant 0 : index
    %48 = vector.load %arg10[%c16_23, %c0_24] : memref<36x256xf32, #tpu.memory_space<vmem>>, vector<4x256xf32>
    tpu.vector_store %arg10[%c16_23, %c0_24], %47 {strides = array<i32>} : memref<36x256xf32, #tpu.memory_space<vmem>>, vector<4x256xf32>,
    %c0_25 = arith.constant 0 : index
    %c18 = arith.constant 18 : index
    %49 = vector.load %arg9[%c0_25, %c18] : memref<4x290xf32, #tpu.memory_space<vmem>>, vector<4x256xf32>
    %cst_26 = arith.constant 0.000000e+00 : f32
    %50 = vector.broadcast %cst_26 : f32 to vector<4x256xf32>
    %51 = vector.shape_cast %23 : vector<1x256xi1> to vector<1x256xi1>
    %52 = vector.broadcast %51 : vector<1x256xi1> to vector<4x256xi1>
    %53 = arith.select %52, %49, %50 : vector<4x256xi1>, vector<4x256xf32>
    %c20 = arith.constant 20 : index
    %c0_27 = arith.constant 0 : index
    %54 = vector.load %arg10[%c20, %c0_27] : memref<36x256xf32, #tpu.memory_space<vmem>>, vector<4x256xf32>
    tpu.vector_store %arg10[%c20, %c0_27], %53 {strides = array<i32>} : memref<36x256xf32, #tpu.memory_space<vmem>>, vector<4x256xf32>,
    %c0_28 = arith.constant 0 : index
    %c32 = arith.constant 32 : index
    %55 = vector.load %arg9[%c0_28, %c32] : memref<4x290xf32, #tpu.memory_space<vmem>>, vector<4x256xf32>
    %cst_29 = arith.constant 0.000000e+00 : f32
    %56 = vector.broadcast %cst_29 : f32 to vector<4x256xf32>
    %57 = vector.shape_cast %21 : vector<1x256xi1> to vector<1x256xi1>
    %58 = vector.broadcast %57 : vector<1x256xi1> to vector<4x256xi1>
    %59 = arith.select %58, %55, %56 : vector<4x256xi1>, vector<4x256xf32>
    %c24 = arith.constant 24 : index
    %c0_30 = arith.constant 0 : index
    %60 = vector.load %arg10[%c24, %c0_30] : memref<36x256xf32, #tpu.memory_space<vmem>>, vector<4x256xf32>
    tpu.vector_store %arg10[%c24, %c0_30], %59 {strides = array<i32>} : memref<36x256xf32, #tpu.memory_space<vmem>>, vector<4x256xf32>,
    %c0_31 = arith.constant 0 : index
    %c33 = arith.constant 33 : index
    %61 = vector.load %arg9[%c0_31, %c33] : memref<4x290xf32, #tpu.memory_space<vmem>>, vector<4x256xf32>
    %c28 = arith.constant 28 : index
    %c0_32 = arith.constant 0 : index
    %62 = vector.load %arg10[%c28, %c0_32] : memref<36x256xf32, #tpu.memory_space<vmem>>, vector<4x256xf32>
    tpu.vector_store %arg10[%c28, %c0_32], %61 {strides = array<i32>} : memref<36x256xf32, #tpu.memory_space<vmem>>, vector<4x256xf32>,
    %c0_33 = arith.constant 0 : index
    %c34 = arith.constant 34 : index
    %63 = vector.load %arg9[%c0_33, %c34] : memref<4x290xf32, #tpu.memory_space<vmem>>, vector<4x256xf32>
    %cst_34 = arith.constant 0.000000e+00 : f32
    %64 = vector.broadcast %cst_34 : f32 to vector<4x256xf32>
    %65 = vector.shape_cast %23 : vector<1x256xi1> to vector<1x256xi1>
    %66 = vector.broadcast %65 : vector<1x256xi1> to vector<4x256xi1>
    %67 = arith.select %66, %63, %64 : vector<4x256xi1>, vector<4x256xf32>
    %c32_35 = arith.constant 32 : index
    %c0_36 = arith.constant 0 : index
    %68 = vector.load %arg10[%c32_35, %c0_36] : memref<36x256xf32, #tpu.memory_space<vmem>>, vector<4x256xf32>
    tpu.vector_store %arg10[%c32_35, %c0_36], %67 {strides = array<i32>} : memref<36x256xf32, #tpu.memory_space<vmem>>, vector<4x256xf32>,
    %c0_37 = arith.constant 0 : index
    %c0_38 = arith.constant 0 : index
    %69 = vector.load %arg2[%c0_37, %c0_38] : memref<8x36xf32, #tpu.memory_space<vmem>>, vector<8x36xf32>
    %c0_39 = arith.constant 0 : index
    %c0_40 = arith.constant 0 : index
    %70 = vector.load %arg10[%c0_39, %c0_40] : memref<36x256xf32, #tpu.memory_space<vmem>>, vector<36x256xf32>
    %cst_41 = arith.constant dense<0.000000e+00> : vector<8x256xf32>
    %71 = tpu.matmul %69, %70, %cst_41 {dimension_numbers = #tpu.dot_dimension_numbers<[1], [0], [0], [1], [0, 0, 1, 1], [], []>} : vector<8x36xf32>, vector<36x256xf32>, vector<8x256xf32> -> vector<8x256xf32>
    %72 = vector.shape_cast %71 : vector<8x256xf32> to vector<1x8x256xf32>
    %cst_42 = arith.constant dense<0.000000e+00> : vector<1xf32>
    %73 = vector.multi_reduction <add>, %72, %cst_42 [1, 2] : vector<1x8x256xf32> to vector<1xf32>
    %74 = vector.shape_cast %73 : vector<1xf32> to vector<1x1x1xf32>
    %75 = vector.extract %74[0, 0, 0] : f32 from vector<1x1x1xf32>
    %cst_43 = arith.constant 2.048000e+03 : f32
    %76 = arith.divf %75, %cst_43 : f32
    %77 = arith.mulf %71, %71 : vector<8x256xf32>
    %78 = vector.shape_cast %77 : vector<8x256xf32> to vector<1x8x256xf32>
    %cst_44 = arith.constant dense<0.000000e+00> : vector<1xf32>
    %79 = vector.multi_reduction <add>, %78, %cst_44 [1, 2] : vector<1x8x256xf32> to vector<1xf32>
    %80 = vector.shape_cast %79 : vector<1xf32> to vector<1x1x1xf32>
    %81 = vector.extract %80[0, 0, 0] : f32 from vector<1x1x1xf32>
    %cst_45 = arith.constant 2.048000e+03 : f32
    %82 = arith.divf %81, %cst_45 : f32
    %83 = arith.mulf %76, %76 : f32
    %84 = arith.subf %82, %83 : f32
    %cst_46 = arith.constant 9.99999974E-6 : f32
    %85 = arith.addf %84, %cst_46 : f32
    %86 = math.rsqrt %85 : f32
    %c0_47 = arith.constant 0 : index
    %c0_48 = arith.constant 0 : index
    %87 = vector.load %arg3[%c0_47, %c0_48] : memref<8x1xf32, #tpu.memory_space<vmem>>, vector<8x1xf32>
    %c0_49 = arith.constant 0 : index
    %c0_50 = arith.constant 0 : index
    %88 = vector.load %arg4[%c0_49, %c0_50] : memref<8x1xf32, #tpu.memory_space<vmem>>, vector<8x1xf32>
    %89 = vector.broadcast %76 : f32 to vector<8x256xf32>
    %90 = arith.subf %71, %89 : vector<8x256xf32>
    %91 = vector.broadcast %86 : f32 to vector<8x1xf32>
    %92 = arith.mulf %91, %87 : vector<8x1xf32>
    %93 = vector.broadcast %92 : vector<8x1xf32> to vector<8x256xf32>
    %94 = arith.mulf %90, %93 : vector<8x256xf32>
    %95 = vector.broadcast %88 : vector<8x1xf32> to vector<8x256xf32>
    %96 = arith.addf %94, %95 : vector<8x256xf32>
    %cst_51 = arith.constant 5.000000e-01 : f32
    %97 = vector.broadcast %cst_51 : f32 to vector<8x256xf32>
    %98 = arith.mulf %97, %96 : vector<8x256xf32>
    %cst_52 = arith.constant 0.707106769 : f32
    %99 = vector.broadcast %cst_52 : f32 to vector<8x256xf32>
    %100 = arith.mulf %96, %99 : vector<8x256xf32>
    %101 = math.erf %100 : vector<8x256xf32>
    %cst_53 = arith.constant 1.000000e+00 : f32
    %102 = vector.broadcast %cst_53 : f32 to vector<8x256xf32>
    %103 = arith.addf %102, %101 : vector<8x256xf32>
    %104 = arith.mulf %98, %103 : vector<8x256xf32>
    %c0_54 = arith.constant 0 : index
    %c17_55 = arith.constant 17 : index
    %105 = vector.load %arg11[%c0_54, %c17_55] : memref<8x290xf32, #tpu.memory_space<vmem>>, vector<8x256xf32>
    tpu.vector_store %arg11[%c0_54, %c17_55], %104 {strides = array<i32>} : memref<8x290xf32, #tpu.memory_space<vmem>>, vector<8x256xf32>,
    %c0_56 = arith.constant 0 : index
    %c0_57 = arith.constant 0 : index
    %106 = vector.load %arg11[%c0_56, %c0_57] : memref<8x290xf32, #tpu.memory_space<vmem>>, vector<8x256xf32>
    %cst_58 = arith.constant 0.000000e+00 : f32
    %107 = vector.broadcast %cst_58 : f32 to vector<8x256xf32>
    %108 = vector.shape_cast %21 : vector<1x256xi1> to vector<1x256xi1>
    %109 = vector.broadcast %108 : vector<1x256xi1> to vector<8x256xi1>
    %110 = arith.select %109, %106, %107 : vector<8x256xi1>, vector<8x256xf32>
    %c0_59 = arith.constant 0 : index
    %c0_60 = arith.constant 0 : index
    %111 = vector.load %arg12[%c0_59, %c0_60] : memref<72x256xf32, #tpu.memory_space<vmem>>, vector<8x256xf32>
    tpu.vector_store %arg12[%c0_59, %c0_60], %110 {strides = array<i32>} : memref<72x256xf32, #tpu.memory_space<vmem>>, vector<8x256xf32>,
    %c0_61 = arith.constant 0 : index
    %c1_62 = arith.constant 1 : index
    %112 = vector.load %arg11[%c0_61, %c1_62] : memref<8x290xf32, #tpu.memory_space<vmem>>, vector<8x256xf32>
    %c8_63 = arith.constant 8 : index
    %c0_64 = arith.constant 0 : index
    %113 = vector.load %arg12[%c8_63, %c0_64] : memref<72x256xf32, #tpu.memory_space<vmem>>, vector<8x256xf32>
    tpu.vector_store %arg12[%c8_63, %c0_64], %112 {strides = array<i32>} : memref<72x256xf32, #tpu.memory_space<vmem>>, vector<8x256xf32>,
    %c0_65 = arith.constant 0 : index
    %c2_66 = arith.constant 2 : index
    %114 = vector.load %arg11[%c0_65, %c2_66] : memref<8x290xf32, #tpu.memory_space<vmem>>, vector<8x256xf32>
    %cst_67 = arith.constant 0.000000e+00 : f32
    %115 = vector.broadcast %cst_67 : f32 to vector<8x256xf32>
    %116 = vector.shape_cast %23 : vector<1x256xi1> to vector<1x256xi1>
    %117 = vector.broadcast %116 : vector<1x256xi1> to vector<8x256xi1>
    %118 = arith.select %117, %114, %115 : vector<8x256xi1>, vector<8x256xf32>
    %c16_68 = arith.constant 16 : index
    %c0_69 = arith.constant 0 : index
    %119 = vector.load %arg12[%c16_68, %c0_69] : memref<72x256xf32, #tpu.memory_space<vmem>>, vector<8x256xf32>
    tpu.vector_store %arg12[%c16_68, %c0_69], %118 {strides = array<i32>} : memref<72x256xf32, #tpu.memory_space<vmem>>, vector<8x256xf32>,
    %c0_70 = arith.constant 0 : index
    %c16_71 = arith.constant 16 : index
    %120 = vector.load %arg11[%c0_70, %c16_71] : memref<8x290xf32, #tpu.memory_space<vmem>>, vector<8x256xf32>
    %cst_72 = arith.constant 0.000000e+00 : f32
    %121 = vector.broadcast %cst_72 : f32 to vector<8x256xf32>
    %122 = vector.shape_cast %21 : vector<1x256xi1> to vector<1x256xi1>
    %123 = vector.broadcast %122 : vector<1x256xi1> to vector<8x256xi1>
    %124 = arith.select %123, %120, %121 : vector<8x256xi1>, vector<8x256xf32>
    %c24_73 = arith.constant 24 : index
    %c0_74 = arith.constant 0 : index
    %125 = vector.load %arg12[%c24_73, %c0_74] : memref<72x256xf32, #tpu.memory_space<vmem>>, vector<8x256xf32>
    tpu.vector_store %arg12[%c24_73, %c0_74], %124 {strides = array<i32>} : memref<72x256xf32, #tpu.memory_space<vmem>>, vector<8x256xf32>,
    %c0_75 = arith.constant 0 : index
    %c17_76 = arith.constant 17 : index
    %126 = vector.load %arg11[%c0_75, %c17_76] : memref<8x290xf32, #tpu.memory_space<vmem>>, vector<8x256xf32>
    %c32_77 = arith.constant 32 : index
    %c0_78 = arith.constant 0 : index
    %127 = vector.load %arg12[%c32_77, %c0_78] : memref<72x256xf32, #tpu.memory_space<vmem>>, vector<8x256xf32>
    tpu.vector_store %arg12[%c32_77, %c0_78], %126 {strides = array<i32>} : memref<72x256xf32, #tpu.memory_space<vmem>>, vector<8x256xf32>,
    %c0_79 = arith.constant 0 : index
    %c18_80 = arith.constant 18 : index
    %128 = vector.load %arg11[%c0_79, %c18_80] : memref<8x290xf32, #tpu.memory_space<vmem>>, vector<8x256xf32>
    %cst_81 = arith.constant 0.000000e+00 : f32
    %129 = vector.broadcast %cst_81 : f32 to vector<8x256xf32>
    %130 = vector.shape_cast %23 : vector<1x256xi1> to vector<1x256xi1>
    %131 = vector.broadcast %130 : vector<1x256xi1> to vector<8x256xi1>
    %132 = arith.select %131, %128, %129 : vector<8x256xi1>, vector<8x256xf32>
    %c40 = arith.constant 40 : index
    %c0_82 = arith.constant 0 : index
    %133 = vector.load %arg12[%c40, %c0_82] : memref<72x256xf32, #tpu.memory_space<vmem>>, vector<8x256xf32>
    tpu.vector_store %arg12[%c40, %c0_82], %132 {strides = array<i32>} : memref<72x256xf32, #tpu.memory_space<vmem>>, vector<8x256xf32>,
    %c0_83 = arith.constant 0 : index
    %c32_84 = arith.constant 32 : index
    %134 = vector.load %arg11[%c0_83, %c32_84] : memref<8x290xf32, #tpu.memory_space<vmem>>, vector<8x256xf32>
    %cst_85 = arith.constant 0.000000e+00 : f32
    %135 = vector.broadcast %cst_85 : f32 to vector<8x256xf32>
    %136 = vector.shape_cast %21 : vector<1x256xi1> to vector<1x256xi1>
    %137 = vector.broadcast %136 : vector<1x256xi1> to vector<8x256xi1>
    %138 = arith.select %137, %134, %135 : vector<8x256xi1>, vector<8x256xf32>
    %c48 = arith.constant 48 : index
    %c0_86 = arith.constant 0 : index
    %139 = vector.load %arg12[%c48, %c0_86] : memref<72x256xf32, #tpu.memory_space<vmem>>, vector<8x256xf32>
    tpu.vector_store %arg12[%c48, %c0_86], %138 {strides = array<i32>} : memref<72x256xf32, #tpu.memory_space<vmem>>, vector<8x256xf32>,
    %c0_87 = arith.constant 0 : index
    %c33_88 = arith.constant 33 : index
    %140 = vector.load %arg11[%c0_87, %c33_88] : memref<8x290xf32, #tpu.memory_space<vmem>>, vector<8x256xf32>
    %c56 = arith.constant 56 : index
    %c0_89 = arith.constant 0 : index
    %141 = vector.load %arg12[%c56, %c0_89] : memref<72x256xf32, #tpu.memory_space<vmem>>, vector<8x256xf32>
    tpu.vector_store %arg12[%c56, %c0_89], %140 {strides = array<i32>} : memref<72x256xf32, #tpu.memory_space<vmem>>, vector<8x256xf32>,
    %c0_90 = arith.constant 0 : index
    %c34_91 = arith.constant 34 : index
    %142 = vector.load %arg11[%c0_90, %c34_91] : memref<8x290xf32, #tpu.memory_space<vmem>>, vector<8x256xf32>
    %cst_92 = arith.constant 0.000000e+00 : f32
    %143 = vector.broadcast %cst_92 : f32 to vector<8x256xf32>
    %144 = vector.shape_cast %23 : vector<1x256xi1> to vector<1x256xi1>
    %145 = vector.broadcast %144 : vector<1x256xi1> to vector<8x256xi1>
    %146 = arith.select %145, %142, %143 : vector<8x256xi1>, vector<8x256xf32>
    %c64 = arith.constant 64 : index
    %c0_93 = arith.constant 0 : index
    %147 = vector.load %arg12[%c64, %c0_93] : memref<72x256xf32, #tpu.memory_space<vmem>>, vector<8x256xf32>
    tpu.vector_store %arg12[%c64, %c0_93], %146 {strides = array<i32>} : memref<72x256xf32, #tpu.memory_space<vmem>>, vector<8x256xf32>,
    %c0_94 = arith.constant 0 : index
    %c0_95 = arith.constant 0 : index
    %148 = vector.load %arg5[%c0_94, %c0_95] : memref<4x72xf32, #tpu.memory_space<vmem>>, vector<4x72xf32>
    %c0_96 = arith.constant 0 : index
    %c0_97 = arith.constant 0 : index
    %149 = vector.load %arg12[%c0_96, %c0_97] : memref<72x256xf32, #tpu.memory_space<vmem>>, vector<72x256xf32>
    %cst_98 = arith.constant dense<0.000000e+00> : vector<4x256xf32>
    %150 = tpu.matmul %148, %149, %cst_98 {dimension_numbers = #tpu.dot_dimension_numbers<[1], [0], [0], [1], [0, 0, 1, 1], [], []>} : vector<4x72xf32>, vector<72x256xf32>, vector<4x256xf32> -> vector<4x256xf32>
    %151 = vector.shape_cast %150 : vector<4x256xf32> to vector<1x4x256xf32>
    %cst_99 = arith.constant dense<0.000000e+00> : vector<1xf32>
    %152 = vector.multi_reduction <add>, %151, %cst_99 [1, 2] : vector<1x4x256xf32> to vector<1xf32>
    %153 = vector.shape_cast %152 : vector<1xf32> to vector<1x1x1xf32>
    %154 = vector.extract %153[0, 0, 0] : f32 from vector<1x1x1xf32>
    %cst_100 = arith.constant 1.024000e+03 : f32
    %155 = arith.divf %154, %cst_100 : f32
    %156 = arith.mulf %150, %150 : vector<4x256xf32>
    %157 = vector.shape_cast %156 : vector<4x256xf32> to vector<1x4x256xf32>
    %cst_101 = arith.constant dense<0.000000e+00> : vector<1xf32>
    %158 = vector.multi_reduction <add>, %157, %cst_101 [1, 2] : vector<1x4x256xf32> to vector<1xf32>
    %159 = vector.shape_cast %158 : vector<1xf32> to vector<1x1x1xf32>
    %160 = vector.extract %159[0, 0, 0] : f32 from vector<1x1x1xf32>
    %cst_102 = arith.constant 1.024000e+03 : f32
    %161 = arith.divf %160, %cst_102 : f32
    %162 = arith.mulf %155, %155 : f32
    %163 = arith.subf %161, %162 : f32
    %cst_103 = arith.constant 9.99999974E-6 : f32
    %164 = arith.addf %163, %cst_103 : f32
    %165 = math.rsqrt %164 : f32
    %c0_104 = arith.constant 0 : index
    %c0_105 = arith.constant 0 : index
    %166 = vector.load %arg6[%c0_104, %c0_105] : memref<4x1xf32, #tpu.memory_space<vmem>>, vector<4x1xf32>
    %c0_106 = arith.constant 0 : index
    %c0_107 = arith.constant 0 : index
    %167 = vector.load %arg7[%c0_106, %c0_107] : memref<4x1xf32, #tpu.memory_space<vmem>>, vector<4x1xf32>
    %168 = vector.broadcast %155 : f32 to vector<4x256xf32>
    %169 = arith.subf %150, %168 : vector<4x256xf32>
    %170 = vector.broadcast %165 : f32 to vector<4x1xf32>
    %171 = arith.mulf %170, %166 : vector<4x1xf32>
    %172 = vector.broadcast %171 : vector<4x1xf32> to vector<4x256xf32>
    %173 = arith.mulf %169, %172 : vector<4x256xf32>
    %174 = vector.broadcast %167 : vector<4x1xf32> to vector<4x256xf32>
    %175 = arith.addf %173, %174 : vector<4x256xf32>
    %176 = arith.addf %25, %175 : vector<4x256xf32>
    %cst_108 = arith.constant 5.000000e-01 : f32
    %177 = vector.broadcast %cst_108 : f32 to vector<4x256xf32>
    %178 = arith.mulf %177, %176 : vector<4x256xf32>
    %cst_109 = arith.constant 0.707106769 : f32
    %179 = vector.broadcast %cst_109 : f32 to vector<4x256xf32>
    %180 = arith.mulf %176, %179 : vector<4x256xf32>
    %181 = math.erf %180 : vector<4x256xf32>
    %cst_110 = arith.constant 1.000000e+00 : f32
    %182 = vector.broadcast %cst_110 : f32 to vector<4x256xf32>
    %183 = arith.addf %182, %181 : vector<4x256xf32>
    %184 = arith.mulf %178, %183 : vector<4x256xf32>
    %c0_111 = arith.constant 0 : index
    %c0_112 = arith.constant 0 : index
    %c0_113 = arith.constant 0 : index
    %185 = vector.load %arg8[%c0_111, %c0_112, %c0_113] : memref<1x4x256xf32, #tpu.memory_space<vmem>>, vector<1x4x256xf32>
    %186 = vector.shape_cast %185 : vector<1x4x256xf32> to vector<4x256xf32>
    %187 = vector.shape_cast %184 : vector<4x256xf32> to vector<1x4x256xf32>
    tpu.vector_store %arg8[%c0_111, %c0_112, %c0_113], %187 {strides = array<i32>} : memref<1x4x256xf32, #tpu.memory_space<vmem>>, vector<1x4x256xf32>,
    return
  }
  func.func @transform_0(%arg0: i32) -> (i32, i32, i32) {
    %c0_i32 = arith.constant 0 : i32
    %c0_i32_0 = arith.constant 0 : i32
    %c0_i32_1 = arith.constant 0 : i32
    return %arg0, %c0_i32, %c0_i32_0 : i32, i32, i32
  }
  func.func @transform_1(%arg0: i32) -> (i32, i32) {
    %c0_i32 = arith.constant 0 : i32
    %c0_i32_0 = arith.constant 0 : i32
    %c0_i32_1 = arith.constant 0 : i32
    return %c0_i32, %c0_i32_0 : i32, i32
  }
  func.func @transform_2(%arg0: i32) -> (i32, i32) {
    %c0_i32 = arith.constant 0 : i32
    %c0_i32_0 = arith.constant 0 : i32
    %c0_i32_1 = arith.constant 0 : i32
    return %c0_i32, %c0_i32_0 : i32, i32
  }
  func.func @transform_3(%arg0: i32) -> (i32, i32) {
    %c0_i32 = arith.constant 0 : i32
    %c0_i32_0 = arith.constant 0 : i32
    %c0_i32_1 = arith.constant 0 : i32
    return %c0_i32, %c0_i32_0 : i32, i32
  }
  func.func @transform_4(%arg0: i32) -> (i32, i32) {
    %c0_i32 = arith.constant 0 : i32
    %c0_i32_0 = arith.constant 0 : i32
    %c0_i32_1 = arith.constant 0 : i32
    return %c0_i32, %c0_i32_0 : i32, i32
  }
  func.func @transform_5(%arg0: i32) -> (i32, i32) {
    %c0_i32 = arith.constant 0 : i32
    %c0_i32_0 = arith.constant 0 : i32
    %c0_i32_1 = arith.constant 0 : i32
    return %c0_i32, %c0_i32_0 : i32, i32
  }
  func.func @transform_6(%arg0: i32) -> (i32, i32) {
    %c0_i32 = arith.constant 0 : i32
    %c0_i32_0 = arith.constant 0 : i32
    %c0_i32_1 = arith.constant 0 : i32
    return %c0_i32, %c0_i32_0 : i32, i32
  }
  func.func @transform_7(%arg0: i32) -> (i32, i32, i32) {
    %c0_i32 = arith.constant 0 : i32
    %c0_i32_0 = arith.constant 0 : i32
    %c0_i32_1 = arith.constant 0 : i32
    return %arg0, %c0_i32, %c0_i32_0 : i32, i32, i32
  }
}

</mosaic_0001>

<llo_original>
// kernel: double_conv.1
$region0: #{double_conv.1}
  #allocation0 [shape = 'u32[]', space=smem, size = 0x4, offset = 0x4, fixed_abs, tag = 'smem constant byte address 0x4 - core index']
  #allocation1 [shape = 'u32[144,128]{1,0:T(1,128)}', space=vmem, size = 0x12000, scoped, tag = 'internal scratch']
  #allocation2 [shape = 'f32[4,290]{1,0:T(4,128)}', space=vmem, size = 0x1800, scoped, tag = 'scratch operand']
  #allocation3 [shape = 'f32[36,256]{1,0:T(8,128)}', space=vmem, size = 0xa000, scoped, tag = 'scratch operand']
  #allocation4 [shape = 'f32[8,290]{1,0:T(8,128)}', space=vmem, size = 0x3000, scoped, tag = 'scratch operand']
  #allocation5 [shape = 'f32[72,256]{1,0:T(8,128)}', space=vmem, size = 0x12000, scoped, tag = 'scratch operand']
  %s0 = inlined_call_operand.vmem [shape: f32[2,4,256], index: 0, kind: input, shape index: {}]
  %s1 = inlined_call_operand.vmem [shape: f32[8,36], index: 1, kind: input, shape index: {}]
  %s2 = inlined_call_operand.vmem [shape: f32[8,1], index: 2, kind: input, shape index: {}]
  %s3 = inlined_call_operand.vmem [shape: f32[8,1], index: 3, kind: input, shape index: {}]
  %s4 = inlined_call_operand.vmem [shape: f32[4,72], index: 4, kind: input, shape index: {}]
  %s5 = inlined_call_operand.vmem [shape: f32[4,1], index: 5, kind: input, shape index: {}]
  %s6 = inlined_call_operand.vmem [shape: f32[4,1], index: 6, kind: input, shape index: {}]
  %s7 = inlined_call_operand.vmem [shape: f32[2,4,256], index: 7, kind: output, shape index: {}]
  %s8 = sld [smem:[#allocation0]]
  $region65: #{double_conv.1} parent=0
    _
  %s10 = ssub.s32 1, %s8
  %s11 = scalar_select 0, %s10, %s8
  loop: start=0, step=1, limit=4
  $region2: #{double_conv.1} parent=0 // loop_pre_header
    _
  $region3: #{double_conv.1} parent=0 // loop_header
    %s13 = sphi 0, %s17
    %p14 = scmp.ge.s32.totalorder %s13, 4
    %s23 = sphi 0, %s25
    %s26 = sphi 0, %s23
    %s27 = sphi 0, %s26
    %s43 = sphi 0, %s27
    %s47 = sphi 0, %s47
    %s49 = sphi 0, %s47
    %s50 = sphi 0, %s49
    %s64 = sphi 0, %s50
    %s68 = sphi 0, %s68
    %s70 = sphi 0, %s68
    %s71 = sphi 0, %s70
    %s85 = sphi 0, %s71
    %s89 = sphi 0, %s89
    %s91 = sphi 0, %s89
    %s92 = sphi 0, %s91
    %s106 = sphi 0, %s92
    %s110 = sphi 0, %s110
    %s112 = sphi 0, %s110
    %s113 = sphi 0, %s112
    %s127 = sphi 0, %s113
    %s131 = sphi 0, %s131
    %s133 = sphi 0, %s131
    %s134 = sphi 0, %s133
    %s148 = sphi 0, %s134
    %s152 = sphi 0, %s152
    %s154 = sphi 0, %s152
    %s155 = sphi 0, %s154
    %s169 = sphi 0, %s155
    %s175 = sphi 0, %s177
    %s178 = sphi 0, %s175
    %s179 = sphi 0, %s178
    %s195 = sphi 0, %s179
  $region4: #{double_conv.1} parent=0 // loop_header_branch
    %16 = sbr.rel (%p14) target = $region8
  $region5: #{double_conv.1} parent=0 // loop_body
    %s18 = ssub.s32 %s13, 1
    %s19 = ssub.s32 %s13, 2
    %s20 = sadd.s32 %s13, 1
    %s21 = ssub.s32 %s13, %s20
    %p22 = scmp.eq.s32.totalorder %s21, 0
    %s24 = sadd.s32 %s23, 1
    %s25 = scalar_select %p22, %s23, %s24
    %p28 = pneg %p22
    %p29 = scmp.eq.s32.totalorder %s13, 1
    %p30 = por %p28, %p29
    %p31 = scmp.ne.s32.totalorder %s23, %s26
    %p32 = scmp.eq.s32.totalorder %s13, 0
    %p33 = por %p31, %p32
    %p34 = scmp.ne.s32.totalorder %s23, %s26
    %p35 = scmp.eq.s32.totalorder %s18, 1
    %p36 = por %p34, %p35
    %p37 = scmp.ne.s32.totalorder %s26, %s27
    %p38 = scmp.eq.s32.totalorder %s18, 0
    %p39 = por %p37, %p38
    %p40 = scmp.ne.s32.totalorder %s26, %s27
    %p41 = scmp.eq.s32.totalorder %s19, 1
    %p42 = por %p40, %p41
    %p44 = scmp.ne.s32.totalorder %s27, %s43
    %p45 = scmp.eq.s32.totalorder %s19, 0
    %p46 = por %p44, %p45
    %s48 = sadd.s32 %s47, 1
    %p51 = scmp.eq.s32.totalorder %s13, 1
    %p52 = scmp.ne.s32.totalorder %s47, %s49
    %p53 = scmp.eq.s32.totalorder %s13, 0
    %p54 = por %p52, %p53
    %p55 = scmp.ne.s32.totalorder %s47, %s49
    %p56 = scmp.eq.s32.totalorder %s18, 1
    %p57 = por %p55, %p56
    %p58 = scmp.ne.s32.totalorder %s49, %s50
    %p59 = scmp.eq.s32.totalorder %s18, 0
    %p60 = por %p58, %p59
    %p61 = scmp.ne.s32.totalorder %s49, %s50
    %p62 = scmp.eq.s32.totalorder %s19, 1
    %p63 = por %p61, %p62
    %p65 = scmp.ne.s32.totalorder %s50, %s64
    %p66 = scmp.eq.s32.totalorder %s19, 0
    %p67 = por %p65, %p66
    %s69 = sadd.s32 %s68, 1
    %p72 = scmp.eq.s32.totalorder %s13, 1
    %p73 = scmp.ne.s32.totalorder %s68, %s70
    %p74 = scmp.eq.s32.totalorder %s13, 0
    %p75 = por %p73, %p74
    %p76 = scmp.ne.s32.totalorder %s68, %s70
    %p77 = scmp.eq.s32.totalorder %s18, 1
    %p78 = por %p76, %p77
    %p79 = scmp.ne.s32.totalorder %s70, %s71
    %p80 = scmp.eq.s32.totalorder %s18, 0
    %p81 = por %p79, %p80
    %p82 = scmp.ne.s32.totalorder %s70, %s71
    %p83 = scmp.eq.s32.totalorder %s19, 1
    %p84 = por %p82, %p83
    %p86 = scmp.ne.s32.totalorder %s71, %s85
    %p87 = scmp.eq.s32.totalorder %s19, 0
    %p88 = por %p86, %p87
    %s90 = sadd.s32 %s89, 1
    %p93 = scmp.eq.s32.totalorder %s13, 1
    %p94 = scmp.ne.s32.totalorder %s89, %s91
    %p95 = scmp.eq.s32.totalorder %s13, 0
    %p96 = por %p94, %p95
    %p97 = scmp.ne.s32.totalorder %s89, %s91
    %p98 = scmp.eq.s32.totalorder %s18, 1
    %p99 = por %p97, %p98
    %p100 = scmp.ne.s32.totalorder %s91, %s92
    %p101 = scmp.eq.s32.totalorder %s18, 0
    %p102 = por %p100, %p101
    %p103 = scmp.ne.s32.totalorder %s91, %s92
    %p104 = scmp.eq.s32.totalorder %s19, 1
    %p105 = por %p103, %p104
    %p107 = scmp.ne.s32.totalorder %s92, %s106
    %p108 = scmp.eq.s32.totalorder %s19, 0
    %p109 = por %p107, %p108
    %s111 = sadd.s32 %s110, 1
    %p114 = scmp.eq.s32.totalorder %s13, 1
    %p115 = scmp.ne.s32.totalorder %s110, %s112
    %p116 = scmp.eq.s32.totalorder %s13, 0
    %p117 = por %p115, %p116
    %p118 = scmp.ne.s32.totalorder %s110, %s112
    %p119 = scmp.eq.s32.totalorder %s18, 1
    %p120 = por %p118, %p119
    %p121 = scmp.ne.s32.totalorder %s112, %s113
    %p122 = scmp.eq.s32.totalorder %s18, 0
    %p123 = por %p121, %p122
    %p124 = scmp.ne.s32.totalorder %s112, %s113
    %p125 = scmp.eq.s32.totalorder %s19, 1
    %p126 = por %p124, %p125
    %p128 = scmp.ne.s32.totalorder %s113, %s127
    %p129 = scmp.eq.s32.totalorder %s19, 0
    %p130 = por %p128, %p129
    %s132 = sadd.s32 %s131, 1
    %p135 = scmp.eq.s32.totalorder %s13, 1
    %p136 = scmp.ne.s32.totalorder %s131, %s133
    %p137 = scmp.eq.s32.totalorder %s13, 0
    %p138 = por %p136, %p137
    %p139 = scmp.ne.s32.totalorder %s131, %s133
    %p140 = scmp.eq.s32.totalorder %s18, 1
    %p141 = por %p139, %p140
    %p142 = scmp.ne.s32.totalorder %s133, %s134
    %p143 = scmp.eq.s32.totalorder %s18, 0
    %p144 = por %p142, %p143
    %p145 = scmp.ne.s32.totalorder %s133, %s134
    %p146 = scmp.eq.s32.totalorder %s19, 1
    %p147 = por %p145, %p146
    %p149 = scmp.ne.s32.totalorder %s134, %s148
    %p150 = scmp.eq.s32.totalorder %s19, 0
    %p151 = por %p149, %p150
    %s153 = sadd.s32 %s152, 1
    %p156 = scmp.eq.s32.totalorder %s13, 1
    %p157 = scmp.ne.s32.totalorder %s152, %s154
    %p158 = scmp.eq.s32.totalorder %s13, 0
    %p159 = por %p157, %p158
    %p160 = scmp.ne.s32.totalorder %s152, %s154
    %p161 = scmp.eq.s32.totalorder %s18, 1
    %p162 = por %p160, %p161
    %p163 = scmp.ne.s32.totalorder %s154, %s155
    %p164 = scmp.eq.s32.totalorder %s18, 0
    %p165 = por %p163, %p164
    %p166 = scmp.ne.s32.totalorder %s154, %s155
    %p167 = scmp.eq.s32.totalorder %s19, 1
    %p168 = por %p166, %p167
    %p170 = scmp.ne.s32.totalorder %s155, %s169
    %p171 = scmp.eq.s32.totalorder %s19, 0
    %p172 = por %p170, %p171
    %s173 = ssub.s32 %s13, %s20
    %p174 = scmp.eq.s32.totalorder %s173, 0
    %s176 = sadd.s32 %s175, 1
    %s177 = scalar_select %p174, %s175, %s176
    %p180 = pneg %p174
    %p181 = scmp.eq.s32.totalorder %s13, 1
    %p182 = por %p180, %p181
    %p183 = scmp.ne.s32.totalorder %s175, %s178
    %p184 = scmp.eq.s32.totalorder %s13, 0
    %p185 = por %p183, %p184
    %p186 = scmp.ne.s32.totalorder %s175, %s178
    %p187 = scmp.eq.s32.totalorder %s18, 1
    %p188 = por %p186, %p187
    %p189 = scmp.ne.s32.totalorder %s178, %s179
    %p190 = scmp.eq.s32.totalorder %s18, 0
    %p191 = por %p189, %p190
    %p192 = scmp.ne.s32.totalorder %s178, %s179
    %p193 = scmp.eq.s32.totalorder %s19, 1
    %p194 = por %p192, %p193
    %p196 = scmp.ne.s32.totalorder %s179, %s195
    %p197 = scmp.eq.s32.totalorder %s19, 0
    %p198 = por %p196, %p197
    %p199 = scmp.le.s32.totalorder 1, %s13
    %p200 = scmp.lt.s32.totalorder %s13, 3
    %p201 = pnand %p199, %p200
    %p202 = pneg %p201
    // Predicated region
    $region9: #{double_conv.1} parent=5 // pred_check
      _
    $region10: #{double_conv.1} parent=5 // pred_check_branch
      %204 = sbr.rel (%p201) target = $region12
    $region11: #{double_conv.1} parent=5 // pred_region
      %s205 = ssub.s32 %s13, 1
      // Predicated region
      $region13: #{double_conv.1} parent=11 // pred_check
        %p206 = pneg %p60
      $region14: #{double_conv.1} parent=11 // pred_check_branch
        %208 = sbr.rel (%p206) target = $region16
      $region15: #{double_conv.1} parent=11 // pred_region
        _
      $region16: #{double_conv.1} parent=11 // pred_fallthru
        _
      // Predicated region
      $region17: #{double_conv.1} parent=11 // pred_check
        %p209 = pneg %p81
      $region18: #{double_conv.1} parent=11 // pred_check_branch
        %211 = sbr.rel (%p209) target = $region20
      $region19: #{double_conv.1} parent=11 // pred_region
        _
      $region20: #{double_conv.1} parent=11 // pred_fallthru
        _
      // Predicated region
      $region21: #{double_conv.1} parent=11 // pred_check
        %p212 = pneg %p102
      $region22: #{double_conv.1} parent=11 // pred_check_branch
        %214 = sbr.rel (%p212) target = $region24
      $region23: #{double_conv.1} parent=11 // pred_region
        _
      $region24: #{double_conv.1} parent=11 // pred_fallthru
        _
      // Predicated region
      $region25: #{double_conv.1} parent=11 // pred_check
        %p215 = pneg %p123
      $region26: #{double_conv.1} parent=11 // pred_check_branch
        %217 = sbr.rel (%p215) target = $region28
      $region27: #{double_conv.1} parent=11 // pred_region
        _
      $region28: #{double_conv.1} parent=11 // pred_fallthru
        _
      // Predicated region
      $region29: #{double_conv.1} parent=11 // pred_check
        %p218 = pneg %p144
      $region30: #{double_conv.1} parent=11 // pred_check_branch
        %220 = sbr.rel (%p218) target = $region32
      $region31: #{double_conv.1} parent=11 // pred_region
        _
      $region32: #{double_conv.1} parent=11 // pred_fallthru
        _
      // Predicated region
      $region33: #{double_conv.1} parent=11 // pred_check
        %p221 = pneg %p165
      $region34: #{double_conv.1} parent=11 // pred_check_branch
        %223 = sbr.rel (%p221) target = $region36
      $region35: #{double_conv.1} parent=11 // pred_region
        _
      $region36: #{double_conv.1} parent=11 // pred_fallthru
        _
    $region12: #{double_conv.1} parent=5 // pred_fallthru
      _
    %p224 = scmp.lt.s32.totalorder %s13, 2
    // Predicated region
    $region37: #{double_conv.1} parent=5 // pred_check
      %p225 = pneg %p224
    $region38: #{double_conv.1} parent=5 // pred_check_branch
      %227 = sbr.rel (%p225) target = $region40
    $region39: #{double_conv.1} parent=5 // pred_region
      // Predicated region
      $region41: #{double_conv.1} parent=39 // pred_check
        %p228 = pneg %p33
      $region42: #{double_conv.1} parent=39 // pred_check_branch
        %230 = sbr.rel (%p228) target = $region44
      $region43: #{double_conv.1} parent=39 // pred_region
        %p231 = scmp.lt.s32.totalorder %s13, 1
        %s232 = scalar_select %p231, %s13, 1
        %s233 = smul.addr %s232, 2
        %s234 = smul.addr %s233, 4
        %s235 = scalar_lea.vmem %s0, %s234
      $region44: #{double_conv.1} parent=39 // pred_fallthru
        _
    $region40: #{double_conv.1} parent=5 // pred_fallthru
      _
    %p236 = scmp.le.s32.totalorder 1, %s13
    %p237 = scmp.lt.s32.totalorder %s13, 3
    %p238 = pnand %p236, %p237
    %p239 = pneg %p238
    // Predicated region
    $region45: #{double_conv.1} parent=5 // pred_check
      _
    $region46: #{double_conv.1} parent=5 // pred_check_branch
      %241 = sbr.rel (%p238) target = $region48
    $region47: #{double_conv.1} parent=5 // pred_region
      %s242 = ssub.s32 %s13, 1
      %p243 = scmp.lt.s32.totalorder %s18, 1
      %s244 = scalar_select %p243, %s18, 1
      %s245 = smul.addr %s244, 2
      %s246 = smul.addr %s245, 4
      %s247 = scalar_lea.vmem %s0, %s246
      %p248 = pneg %p39
      %p249 = pneg %p36
      %p250 = pneg %p60
      %p251 = pneg %p57
      %p252 = pneg %p81
      %p253 = pneg %p78
      %p254 = pneg %p102
      %p255 = pneg %p99
      %p256 = pneg %p123
      %p257 = pneg %p120
      %p258 = pneg %p144
      %p259 = pneg %p141
      %p260 = pneg %p165
      %p261 = pneg %p162
      %p262 = pneg %p191
      %p263 = pneg %p188
      %p264 = scmp.lt.s32.totalorder %s18, 1
      %s265 = scalar_select %p264, %s18, 1
      %s266 = smul.addr %s265, 2
      %s267 = smul.addr %s266, 4
      %s268 = scalar_lea.vmem %s7, %s267
      %p269 = scmp.lt.s32.totalorder %s18, 1
      %s270 = scalar_select %p269, %s18, 1
      %s271 = smul.addr %s270, 2
      %s272 = smul.addr %s271, 4
      %s273 = scalar_lea.vmem %s0, %s272
      %p274 = scmp.lt.s32.totalorder %s18, 1
      %s275 = scalar_select %p274, %s18, 1
      %s276 = smul.addr %s275, 2
      %s277 = smul.addr %s276, 4
      %s278 = scalar_lea.vmem %s7, %s277
      %p279 = scmp.eq.s32.totalorder %s18, 0
      // Predicated region
      $region49: #{double_conv.1} parent=47 // pred_check
        %p280 = pneg %p279
      $region50: #{double_conv.1} parent=47 // pred_check_branch
        %282 = sbr.rel (%p280) target = $region52
      $region51: #{double_conv.1} parent=47 // pred_region
        %283 = vst [vmem:[#allocation2] sm:$0xff] 0.0
        %vm284 = vcmask 273408
        %285 = vst.msk [vmem:[#allocation2 + $0x8] sm:$0xf] %vm284, 0.0
        %286 = vst [vmem:[#allocation4] sm:$0xff] 0.0
        %287 = vst [vmem:[#allocation4 + $0x8] sm:$0xff] 0.0
        %vm288 = vcmask 277504
        %289 = vst.msk [vmem:[#allocation4 + $0x10] sm:$0xff] %vm288, 0.0
      $region52: #{double_conv.1} parent=47 // pred_fallthru
        _
      %v290 = vlaneseq
      %v291 = vand.u32 %v290, 127
      %v292 = vadd.s32 %v291, 128
      %vm293 = vcmp.lt.s32.totalorder %v291, 0
      %v294 = vsub.s32 0, %v291
      %v295 = vsel %vm293, %v294, %v291
      %v296 = vshrl.u32 %v295, 4
      %v297 = vand.u32 %v295, 15
      %v298 = vsub.s32 0, %v297
      %v299 = vsel %vm293, %v298, %v297
      %vm300 = vcmp.lt.s32.totalorder %v292, 0
      %v301 = vsub.s32 0, %v292
      %v302 = vsel %vm300, %v301, %v292
      %v303 = vshrl.u32 %v302, 4
      %v304 = vand.u32 %v302, 15
      %v305 = vsub.s32 0, %v304
      %v306 = vsel %vm300, %v305, %v304
      %vm307 = vcmp.ne.s32.totalorder %v299, 0
      %vm308 = vcmp.ne.s32.totalorder %v306, 0
      %vm309 = vcmp.lt.s32.totalorder %v299, 0
      %vm310 = vcmp.lt.s32.totalorder %v306, 0
      %vm311 = vmand %vm309, %vm307
      %vm312 = vmand %vm310, %vm308
      %v313 = vadd.s32 %v299, 16
      %v314 = vadd.s32 %v306, 16
      %v315 = vsel %vm311, %v313, %v299
      %v316 = vsel %vm312, %v314, %v306
      %vm317 = vcmp.ge.s32.totalorder %v315, 1
      %vm318 = vcmp.ge.s32.totalorder %v316, 1
      %vm319 = vcmp.lt.s32.totalorder %v315, 15
      %vm320 = vcmp.lt.s32.totalorder %v316, 15
      %v321 = vld [vmem:[%s273] sm:$0xff]
      %323 = vrot.lane.b32.xlu0 %v321, 17
      %v324 = vpop.permute.xlu0 %323
      %v325 = vrot.slane %v324, 4
      %vm326 = vcmask 138240
      %v327 = vsel %vm326, %v325, %v324
      %vm330 = vcmask 1043592
      %vm331 = vcmask 1047556
      %vm332 = vmor %vm331, %vm330
      %333 = vst.msk [vmem:[#allocation2] sm:$0xff] %vm332, %v327
      %vm334 = vcmask 134144
      %335 = vst.msk [vmem:[#allocation2 + $0x8] sm:$0xf] %vm334, %v325
      %v336 = vld [vmem:[#allocation2] sm:$0xff]
      %v337 = vsel %vm317, 1, 0
      %v338 = vsel %vm318, 1, 0
      %vm339 = vcmp.eq.s32.totalorder %v337, 1
      %vm340 = vcmp.eq.s32.totalorder %v338, 1
      %v342 = vcombine.high %v336, %v336
      %v344 = vsel %vm339, %v336, 0.0
      %v345 = vsel %vm340, %v342, 0.0
      %346 = vst [vmem:[#allocation3] sm:$0xf] %v344
      %347 = vst [vmem:[#allocation3 + $0x8] sm:$0xf] %v345
      %v348 = vld [vmem:[#allocation2] sm:$0xff]
      %v349 = vld [vmem:[#allocation2 + $0x8] sm:$0xf]
      %v352 = vcombine.low %v348, %v348
      %v353 = vcombine.low %v349, %v349
      %354 = vrot.lane.b32.xlu0 %v352, 127
      %v355 = vpop.permute.xlu0 %354
      %356 = vrot.lane.b32.xlu0 %v348, 127
      %v357 = vpop.permute.xlu0 %356
      %358 = vrot.lane.b32.xlu0 %v353, 127
      %v359 = vpop.permute.xlu0 %358
      %vm360 = vcmask 1039360
      %v361 = vsel %vm360, %v355, %v357
      %v362 = vsel %vm360, %v357, %v359
      %365 = vst [vmem:[#allocation3] sm:$0xf0] %v361
      %366 = vst [vmem:[#allocation3 + $0x8] sm:$0xf0] %v362
      %v367 = vld [vmem:[#allocation2] sm:$0xff]
      %v368 = vld [vmem:[#allocation2 + $0x8] sm:$0xf]
      %v369 = vsel %vm319, 1, 0
      %v370 = vsel %vm320, 1, 0
      %vm371 = vcmp.eq.s32.totalorder %v369, 1
      %vm372 = vcmp.eq.s32.totalorder %v370, 1
      %v375 = vcombine.high %v367, %v367
      %376 = vrot.lane.b32.xlu0 %v367, 126
      %v377 = vpop.permute.xlu0 %376
      %378 = vrot.lane.b32.xlu0 %v375, 126
      %v379 = vpop.permute.xlu0 %378
      %380 = vrot.lane.b32.xlu0 %v368, 126
      %v381 = vpop.permute.xlu0 %380
      %vm382 = vcmask 1031168
      %v383 = vsel %vm382, %v377, %v379
      %v384 = vsel %vm382, %v379, %v381
      %v387 = vsel %vm371, %v383, 0.0
      %v388 = vsel %vm372, %v384, 0.0
      %389 = vst [vmem:[#allocation3 + $0x10] sm:$0xf] %v387
      %390 = vst [vmem:[#allocation3 + $0x18] sm:$0xf] %v388
      %v391 = vld [vmem:[#allocation2] sm:$0xff]
      %v392 = vld [vmem:[#allocation2 + $0x8] sm:$0xf]
      %v395 = vcombine.high %v391, %v391
      %396 = vrot.lane.b32.xlu0 %v391, 112
      %v397 = vpop.permute.xlu0 %396
      %398 = vrot.lane.b32.xlu0 %v395, 112
      %v399 = vpop.permute.xlu0 %398
      %400 = vrot.lane.b32.xlu0 %v392, 112
      %v401 = vpop.permute.xlu0 %400
      %vm402 = vcmask 916480
      %v403 = vsel %vm402, %v397, %v399
      %v404 = vsel %vm402, %v399, %v401
      %v407 = vsel %vm339, %v403, 0.0
      %v408 = vsel %vm340, %v404, 0.0
      %v411 = vrot.slane %v407, 4
      %v412 = vrot.slane %v408, 4
      %415 = vst [vmem:[#allocation3 + $0x10] sm:$0xf0] %v411
      %416 = vst [vmem:[#allocation3 + $0x18] sm:$0xf0] %v412
      %v417 = vld [vmem:[#allocation2] sm:$0xff]
      %v418 = vld [vmem:[#allocation2 + $0x8] sm:$0xf]
      %v421 = vcombine.high %v417, %v417
      %422 = vrot.lane.b32.xlu0 %v417, 111
      %v423 = vpop.permute.xlu0 %422
      %424 = vrot.lane.b32.xlu0 %v421, 111
      %v425 = vpop.permute.xlu0 %424
      %426 = vrot.lane.b32.xlu0 %v418, 111
      %v427 = vpop.permute.xlu0 %426
      %vm428 = vcmask 908288
      %v429 = vsel %vm428, %v423, %v425
      %v430 = vsel %vm428, %v425, %v427
      %433 = vst [vmem:[#allocation3 + $0x20] sm:$0xf] %v429
      %434 = vst [vmem:[#allocation3 + $0x28] sm:$0xf] %v430
      %v435 = vld [vmem:[#allocation2] sm:$0xff]
      %v436 = vld [vmem:[#allocation2 + $0x8] sm:$0xf]
      %v439 = vcombine.high %v435, %v435
      %440 = vrot.lane.b32.xlu0 %v435, 110
      %v441 = vpop.permute.xlu0 %440
      %442 = vrot.lane.b32.xlu0 %v439, 110
      %v443 = vpop.permute.xlu0 %442
      %444 = vrot.lane.b32.xlu0 %v436, 110
      %v445 = vpop.permute.xlu0 %444
      %vm446 = vcmask 900096
      %v447 = vsel %vm446, %v441, %v443
      %v448 = vsel %vm446, %v443, %v445
      %v451 = vsel %vm371, %v447, 0.0
      %v452 = vsel %vm372, %v448, 0.0
      %v455 = vrot.slane %v451, 4
      %v456 = vrot.slane %v452, 4
      %459 = vst [vmem:[#allocation3 + $0x20] sm:$0xf0] %v455
      %460 = vst [vmem:[#allocation3 + $0x28] sm:$0xf0] %v456
      %v461 = vld [vmem:[#allocation2] sm:$0xff]
      %v462 = vld [vmem:[#allocation2 + $0x8] sm:$0xf]
      %v465 = vcombine.high %v461, %v461
      %466 = vrot.lane.b32.xlu0 %v461, 96
      %v467 = vpop.permute.xlu0 %466
      %468 = vrot.lane.b32.xlu0 %v465, 96
      %v469 = vpop.permute.xlu0 %468
      %470 = vrot.lane.b32.xlu0 %v462, 96
      %v471 = vpop.permute.xlu0 %470
      %vm472 = vcmask 785408
      %v473 = vsel %vm472, %v467, %v469
      %v474 = vsel %vm472, %v469, %v471
      %v477 = vsel %vm339, %v473, 0.0
      %v478 = vsel %vm340, %v474, 0.0
      %479 = vst [vmem:[#allocation3 + $0x30] sm:$0xf] %v477
      %480 = vst [vmem:[#allocation3 + $0x38] sm:$0xf] %v478
      %v481 = vld [vmem:[#allocation2] sm:$0xff]
      %v482 = vld [vmem:[#allocation2 + $0x8] sm:$0xf]
      %v485 = vcombine.low %v481, %v481
      %v486 = vcombine.low %v482, %v482
      %487 = vrot.lane.b32.xlu0 %v485, 95
      %v488 = vpop.permute.xlu0 %487
      %489 = vrot.lane.b32.xlu0 %v481, 95
      %v490 = vpop.permute.xlu0 %489
      %491 = vrot.lane.b32.xlu0 %v486, 95
      %v492 = vpop.permute.xlu0 %491
      %vm493 = vcmask 777216
      %v494 = vsel %vm493, %v488, %v490
      %v495 = vsel %vm493, %v490, %v492
      %498 = vst [vmem:[#allocation3 + $0x30] sm:$0xf0] %v494
      %499 = vst [vmem:[#allocation3 + $0x38] sm:$0xf0] %v495
      %v500 = vld [vmem:[#allocation2] sm:$0xff]
      %v501 = vld [vmem:[#allocation2 + $0x8] sm:$0xf]
      %v504 = vcombine.high %v500, %v500
      %505 = vrot.lane.b32.xlu0 %v500, 94
      %v506 = vpop.permute.xlu0 %505
      %507 = vrot.lane.b32.xlu0 %v504, 94
      %v508 = vpop.permute.xlu0 %507
      %509 = vrot.lane.b32.xlu0 %v501, 94
      %v510 = vpop.permute.xlu0 %509
      %vm511 = vcmask 769024
      %v512 = vsel %vm511, %v506, %v508
      %v513 = vsel %vm511, %v508, %v510
      %v516 = vsel %vm371, %v512, 0.0
      %v517 = vsel %vm372, %v513, 0.0
      %518 = vst [vmem:[#allocation3 + $0x40] sm:$0xf] %v516
      %519 = vst [vmem:[#allocation3 + $0x48] sm:$0xf] %v517
      %v520 = vld [vmem:[%s1] sm:$0xff]
      %v521 = vld [vmem:[#allocation3] sm:$0xff]
      %v522 = vld [vmem:[#allocation3 + $0x8] sm:$0xff]
      %v523 = vld [vmem:[#allocation3 + $0x10] sm:$0xff]
      %v524 = vld [vmem:[#allocation3 + $0x18] sm:$0xff]
      %v525 = vld [vmem:[#allocation3 + $0x20] sm:$0xff]
      %v526 = vld [vmem:[#allocation3 + $0x28] sm:$0xff]
      %v527 = vld [vmem:[#allocation3 + $0x30] sm:$0xff]
      %v528 = vld [vmem:[#allocation3 + $0x38] sm:$0xff]
      %v529 = vld [vmem:[#allocation3 + $0x40] sm:$0xf]
      %v530 = vld [vmem:[#allocation3 + $0x48] sm:$0xf]
      %vm531 = vcmask 293888
      %v533 = vsel %vm531, %v520, 0
      %vm535 = vcmask 1043456
      %v537 = vsel %vm535, %v529, 0
      %v540 = vsel %vm535, %v530, 0
      %542 = vmatprep.subr.mxu0 %v522
      %543 = vmatpush1.msra.mxu0 %v521
      %544 = vmatprep.subr.mxu0 %v524
      %545 = vmatpush1.msra.mxu0 %v523
      %546 = vmatprep.subr.mxu0 %v526
      %547 = vmatpush1.msra.mxu0 %v525
      %548 = vmatprep.subr.mxu0 %v528
      %549 = vmatpush1.msra.mxu0 %v527
      %550 = vmatprep.subr.mxu0 %v540
      %551 = vmatpush1.msra.mxu0 %v537
      %552 = vmatprep.subr.mxu0 0.0
      %553 = vmatpush1.msra.mxu0 0.0
      %554 = vmatprep.subr.mxu0 0.0
      %555 = vmatpush1.msra.mxu0 0.0
      %556 = vmatprep.subr.mxu0 0.0
      %557 = vmatpush1.msra.mxu0 0.0
      %558 = vmatprep.subr.mxu0 0.0
      %559 = vmatpush1.msra.mxu0 0.0
      %560 = vmatprep.subr.mxu0 0.0
      %561 = vmatpush1.msra.mxu0 0.0
      %562 = vmatprep.subr.mxu0 0.0
      %563 = vmatpush1.msra.mxu0 0.0
      %564 = vmatprep.subr.mxu0 0.0
      %565 = vmatpush1.msra.mxu0 0.0
      %566 = vmatprep.subr.mxu0 0.0
      %567 = vmatpush1.msra.mxu0 0.0
      %568 = vmatprep.subr.mxu0 0.0
      %569 = vmatpush1.msra.mxu0 0.0
      %570 = vmatprep.subr.mxu0 0.0
      %571 = vmatpush1.msra.mxu0 0.0
      %572 = vmatprep.subr.mxu0 0.0
      %573 = vmatpush1.msra.mxu0 0.0
      %574 = vmatprep.subr.mxu0 0.0
      %575 = vmatpush1.msra.mxu0 0.0
      %576 = vmatprep.subr.mxu0 0.0
      %577 = vmatpush1.msra.mxu0 0.0
      %578 = vmatprep.subr.mxu0 0.0
      %579 = vmatpush1.msra.mxu0 0.0
      %580 = vmatprep.subr.mxu0 0.0
      %581 = vmatpush1.msra.mxu0 0.0
      %582 = vmatprep.subr.mxu0 0.0
      %583 = vmatpush1.msra.mxu0 0.0
      %584 = vmatprep.subr.mxu0 0.0
      %585 = vmatpush1.msra.mxu0 0.0
      %586 = vmatprep.subr.mxu0 0.0
      %587 = vmatpush1.msra.mxu0 0.0
      %588 = vmatprep.subr.mxu0 0.0
      %589 = vmatpush1.msra.mxu0 0.0
      %590 = vmatprep.subr.mxu0 0.0
      %591 = vmatpush1.msra.mxu0 0.0
      %592 = vmatprep.subr.mxu0 0.0
      %593 = vmatpush1.msra.mxu0 0.0
      %594 = vmatprep.subr.mxu0 0.0
      %595 = vmatpush1.msra.mxu0 0.0
      %596 = vmatprep.subr.mxu0 0.0
      %597 = vmatpush1.msra.mxu0 0.0
      %598 = vmatprep.subr.mxu0 0.0
      %599 = vmatpush1.msra.mxu0 0.0
      %600 = vmatprep.subr.mxu0 0.0
      %601 = vmatpush1.msra.mxu0 0.0
      %602 = vmatprep.subr.mxu0 0.0
      %603 = vmatpush1.msra.mxu0 0.0
      %604 = vmatprep.subr.mxu0 0.0
      %605 = vmatpush1.msra.mxu0 0.0
      %606 = vmatprep.mubr.f32.mxu0 0.0
      %607 = vmatmul.mubr.f32.gmra.mrb[0].mxu0 %v533
      %v608 = vpop.f32.mrb[0].mxu0
      %v609 = vadd.f32 0.0, %v608
      %v610 = vpop.f32.mrb[0].mxu0
      %v611 = vadd.f32 0.0, %v610
      %612 = vdwg.mxu0
      %v613 = vadd.f32 %v609, %v611
      %614 = vadd.xlane.f32.xlu0 %v613
      %v615 = vpop.xlane.xlu0 %614
      %v616 = vrot.slane %v615, 4
      %v617 = vadd.f32 %v615, %v616
      %v618 = vrot.slane %v617, 2
      %v619 = vadd.f32 %v617, %v618
      %v620 = vrot.slane %v619, 1
      %v621 = vadd.f32 %v619, %v620
      %s622 = vtos %v621
      %v623 = vrcp.pop 2048.0
      %s624 = vtos %v623
      %s625 = smul.f32 %s622, %s624
      %v626 = vmul.f32 %v609, %v609
      %v627 = vmul.f32 %v611, %v611
      %v628 = vadd.f32 %v626, %v627
      %629 = vadd.xlane.f32.xlu0 %v628
      %v630 = vpop.xlane.xlu0 %629
      %v631 = vrot.slane %v630, 4
      %v632 = vadd.f32 %v630, %v631
      %v633 = vrot.slane %v632, 2
      %v634 = vadd.f32 %v632, %v633
      %v635 = vrot.slane %v634, 1
      %v636 = vadd.f32 %v634, %v635
      %s637 = vtos %v636
      %v638 = vrcp.pop 2048.0
      %s639 = vtos %v638
      %s640 = smul.f32 %s637, %s639
      %s641 = smul.f32 %s625, %s625
      %s642 = ssub.f32 %s640, %s641
      %s643 = sadd.f32 %s642, 1e-05
      %v644 = vstv %s643
      %v645 = vrsqrt.pop %v644
      %s646 = vtos %v645
      %v647 = vld [vmem:[%s2] sm:$0xff]
      %v648 = vld [vmem:[%s3] sm:$0xff]
      %v649 = vstv %s625
      %v650 = vsub.f32 %v609, %v649
      %v651 = vsub.f32 %v611, %v649
      %v652 = vstv %s646
      %v653 = vmul.f32 %v652, %v647
      %655 = vset.pattern.permute.xlu0 0
      %656 = vperm.xlu0 %655, %v653
      %v657 = vpop.permute.xlu0 %656
      %v659 = vmul.f32 %v650, %v657
      %v660 = vmul.f32 %v651, %v657
      %662 = vset.pattern.permute.xlu0 0
      %663 = vperm.xlu0 %662, %v648
      %v664 = vpop.permute.xlu0 %663
      %v666 = vadd.f32 %v659, %v664
      %v667 = vadd.f32 %v660, %v664
      %v668 = vmul.f32 %v666, 0.5
      %v669 = vmul.f32 %v667, 0.5
      %v670 = vmul.f32 %v666, 0.70710677
      %v671 = vmul.f32 %v667, 0.70710677
      %v672 = verf.f32.pop %v670
      %v673 = verf.f32.pop %v671
      %v674 = vadd.f32 %v672, 1.0
      %v675 = vadd.f32 %v673, 1.0
      %v676 = vmul.f32 %v668, %v674
      %v677 = vmul.f32 %v669, %v675
      %680 = vrot.lane.b32.xlu0 %v676, 17
      %v681 = vpop.permute.xlu0 %680
      %682 = vrot.lane.b32.xlu0 %v677, 17
      %v683 = vpop.permute.xlu0 %682
      %v684 = vsel %vm326, %v681, %v683
      %vm688 = vcmask 1047688
      %689 = vst.msk [vmem:[#allocation4] sm:$0xff] %vm688, %v681
      %690 = vst [vmem:[#allocation4 + $0x8] sm:$0xff] %v684
      %691 = vst.msk [vmem:[#allocation4 + $0x10] sm:$0xff] %vm326, %v683
      %v692 = vld [vmem:[#allocation4] sm:$0xff]
      %v693 = vld [vmem:[#allocation4 + $0x8] sm:$0xff]
      %v694 = vsel %vm339, %v692, 0.0
      %v695 = vsel %vm340, %v693, 0.0
      %696 = vst [vmem:[#allocation5] sm:$0xff] %v694
      %697 = vst [vmem:[#allocation5 + $0x8] sm:$0xff] %v695
      %v698 = vld [vmem:[#allocation4] sm:$0xff]
      %v699 = vld [vmem:[#allocation4 + $0x8] sm:$0xff]
      %v700 = vld [vmem:[#allocation4 + $0x10] sm:$0xff]
      %704 = vrot.lane.b32.xlu0 %v698, 127
      %v705 = vpop.permute.xlu0 %704
      %706 = vrot.lane.b32.xlu0 %v699, 127
      %v707 = vpop.permute.xlu0 %706
      %708 = vrot.lane.b32.xlu0 %v700, 127
      %v709 = vpop.permute.xlu0 %708
      %v710 = vsel %vm360, %v705, %v707
      %v711 = vsel %vm360, %v707, %v709
      %714 = vst [vmem:[#allocation5 + $0x10] sm:$0xff] %v710
      %715 = vst [vmem:[#allocation5 + $0x18] sm:$0xff] %v711
      %v716 = vld [vmem:[#allocation4] sm:$0xff]
      %v717 = vld [vmem:[#allocation4 + $0x8] sm:$0xff]
      %v718 = vld [vmem:[#allocation4 + $0x10] sm:$0xff]
      %722 = vrot.lane.b32.xlu0 %v716, 126
      %v723 = vpop.permute.xlu0 %722
      %724 = vrot.lane.b32.xlu0 %v717, 126
      %v725 = vpop.permute.xlu0 %724
      %726 = vrot.lane.b32.xlu0 %v718, 126
      %v727 = vpop.permute.xlu0 %726
      %v728 = vsel %vm382, %v723, %v725
      %v729 = vsel %vm382, %v725, %v727
      %v732 = vsel %vm371, %v728, 0.0
      %v733 = vsel %vm372, %v729, 0.0
      %734 = vst [vmem:[#allocation5 + $0x20] sm:$0xff] %v732
      %735 = vst [vmem:[#allocation5 + $0x28] sm:$0xff] %v733
      %v736 = vld [vmem:[#allocation4] sm:$0xff]
      %v737 = vld [vmem:[#allocation4 + $0x8] sm:$0xff]
      %v738 = vld [vmem:[#allocation4 + $0x10] sm:$0xff]
      %742 = vrot.lane.b32.xlu0 %v736, 112
      %v743 = vpop.permute.xlu0 %742
      %744 = vrot.lane.b32.xlu0 %v737, 112
      %v745 = vpop.permute.xlu0 %744
      %746 = vrot.lane.b32.xlu0 %v738, 112
      %v747 = vpop.permute.xlu0 %746
      %v748 = vsel %vm402, %v743, %v745
      %v749 = vsel %vm402, %v745, %v747
      %v752 = vsel %vm339, %v748, 0.0
      %v753 = vsel %vm340, %v749, 0.0
      %754 = vst [vmem:[#allocation5 + $0x30] sm:$0xff] %v752
      %755 = vst [vmem:[#allocation5 + $0x38] sm:$0xff] %v753
      %v756 = vld [vmem:[#allocation4] sm:$0xff]
      %v757 = vld [vmem:[#allocation4 + $0x8] sm:$0xff]
      %v758 = vld [vmem:[#allocation4 + $0x10] sm:$0xff]
      %762 = vrot.lane.b32.xlu0 %v756, 111
      %v763 = vpop.permute.xlu0 %762
      %764 = vrot.lane.b32.xlu0 %v757, 111
      %v765 = vpop.permute.xlu0 %764
      %766 = vrot.lane.b32.xlu0 %v758, 111
      %v767 = vpop.permute.xlu0 %766
      %v768 = vsel %vm428, %v763, %v765
      %v769 = vsel %vm428, %v765, %v767
      %772 = vst [vmem:[#allocation5 + $0x40] sm:$0xff] %v768
      %773 = vst [vmem:[#allocation5 + $0x48] sm:$0xff] %v769
      %v774 = vld [vmem:[#allocation4] sm:$0xff]
      %v775 = vld [vmem:[#allocation4 + $0x8] sm:$0xff]
      %v776 = vld [vmem:[#allocation4 + $0x10] sm:$0xff]
      %780 = vrot.lane.b32.xlu0 %v774, 110
      %v781 = vpop.permute.xlu0 %780
      %782 = vrot.lane.b32.xlu0 %v775, 110
      %v783 = vpop.permute.xlu0 %782
      %784 = vrot.lane.b32.xlu0 %v776, 110
      %v785 = vpop.permute.xlu0 %784
      %v786 = vsel %vm446, %v781, %v783
      %v787 = vsel %vm446, %v783, %v785
      %v790 = vsel %vm371, %v786, 0.0
      %v791 = vsel %vm372, %v787, 0.0
      %792 = vst [vmem:[#allocation5 + $0x50] sm:$0xff] %v790
      %793 = vst [vmem:[#allocation5 + $0x58] sm:$0xff] %v791
      %v794 = vld [vmem:[#allocation4] sm:$0xff]
      %v795 = vld [vmem:[#allocation4 + $0x8] sm:$0xff]
      %v796 = vld [vmem:[#allocation4 + $0x10] sm:$0xff]
      %800 = vrot.lane.b32.xlu0 %v794, 96
      %v801 = vpop.permute.xlu0 %800
      %802 = vrot.lane.b32.xlu0 %v795, 96
      %v803 = vpop.permute.xlu0 %802
      %804 = vrot.lane.b32.xlu0 %v796, 96
      %v805 = vpop.permute.xlu0 %804
      %v806 = vsel %vm472, %v801, %v803
      %v807 = vsel %vm472, %v803, %v805
      %v810 = vsel %vm339, %v806, 0.0
      %v811 = vsel %vm340, %v807, 0.0
      %812 = vst [vmem:[#allocation5 + $0x60] sm:$0xff] %v810
      %813 = vst [vmem:[#allocation5 + $0x68] sm:$0xff] %v811
      %v814 = vld [vmem:[#allocation4] sm:$0xff]
      %v815 = vld [vmem:[#allocation4 + $0x8] sm:$0xff]
      %v816 = vld [vmem:[#allocation4 + $0x10] sm:$0xff]
      %820 = vrot.lane.b32.xlu0 %v814, 95
      %v821 = vpop.permute.xlu0 %820
      %822 = vrot.lane.b32.xlu0 %v815, 95
      %v823 = vpop.permute.xlu0 %822
      %824 = vrot.lane.b32.xlu0 %v816, 95
      %v825 = vpop.permute.xlu0 %824
      %v826 = vsel %vm493, %v821, %v823
      %v827 = vsel %vm493, %v823, %v825
      %830 = vst [vmem:[#allocation5 + $0x70] sm:$0xff] %v826
      %831 = vst [vmem:[#allocation5 + $0x78] sm:$0xff] %v827
      %v832 = vld [vmem:[#allocation4] sm:$0xff]
      %v833 = vld [vmem:[#allocation4 + $0x8] sm:$0xff]
      %v834 = vld [vmem:[#allocation4 + $0x10] sm:$0xff]
      %838 = vrot.lane.b32.xlu0 %v832, 94
      %v839 = vpop.permute.xlu0 %838
      %840 = vrot.lane.b32.xlu0 %v833, 94
      %v841 = vpop.permute.xlu0 %840
      %842 = vrot.lane.b32.xlu0 %v834, 94
      %v843 = vpop.permute.xlu0 %842
      %v844 = vsel %vm511, %v839, %v841
      %v845 = vsel %vm511, %v841, %v843
      %v848 = vsel %vm371, %v844, 0.0
      %v849 = vsel %vm372, %v845, 0.0
      %850 = vst [vmem:[#allocation5 + $0x80] sm:$0xff] %v848
      %851 = vst [vmem:[#allocation5 + $0x88] sm:$0xff] %v849
      %v852 = vld [vmem:[%s4] sm:$0xf]
      %v853 = vld [vmem:[#allocation5] sm:$0xff]
      %v854 = vld [vmem:[#allocation5 + $0x8] sm:$0xff]
      %v855 = vld [vmem:[#allocation5 + $0x10] sm:$0xff]
      %v856 = vld [vmem:[#allocation5 + $0x18] sm:$0xff]
      %v857 = vld [vmem:[#allocation5 + $0x20] sm:$0xff]
      %v858 = vld [vmem:[#allocation5 + $0x28] sm:$0xff]
      %v859 = vld [vmem:[#allocation5 + $0x30] sm:$0xff]
      %v860 = vld [vmem:[#allocation5 + $0x38] sm:$0xff]
      %v861 = vld [vmem:[#allocation5 + $0x40] sm:$0xff]
      %v862 = vld [vmem:[#allocation5 + $0x48] sm:$0xff]
      %v863 = vld [vmem:[#allocation5 + $0x50] sm:$0xff]
      %v864 = vld [vmem:[#allocation5 + $0x58] sm:$0xff]
      %v865 = vld [vmem:[#allocation5 + $0x60] sm:$0xff]
      %v866 = vld [vmem:[#allocation5 + $0x68] sm:$0xff]
      %v867 = vld [vmem:[#allocation5 + $0x70] sm:$0xff]
      %v868 = vld [vmem:[#allocation5 + $0x78] sm:$0xff]
      %v869 = vld [vmem:[#allocation5 + $0x80] sm:$0xff]
      %v870 = vld [vmem:[#allocation5 + $0x88] sm:$0xff]
      %vm871 = vcmask 588800
      %v873 = vsel %vm871, %v852, 0
      %875 = vmatprep.subr.mxu0 %v854
      %876 = vmatpush1.msra.mxu0 %v853
      %877 = vmatprep.subr.mxu0 %v856
      %878 = vmatpush1.msra.mxu0 %v855
      %879 = vmatprep.subr.mxu0 %v858
      %880 = vmatpush1.msra.mxu0 %v857
      %881 = vmatprep.subr.mxu0 %v860
      %882 = vmatpush1.msra.mxu0 %v859
      %883 = vmatprep.subr.mxu0 %v862
      %884 = vmatpush1.msra.mxu0 %v861
      %885 = vmatprep.subr.mxu0 %v864
      %886 = vmatpush1.msra.mxu0 %v863
      %887 = vmatprep.subr.mxu0 %v866
      %888 = vmatpush1.msra.mxu0 %v865
      %889 = vmatprep.subr.mxu0 %v868
      %890 = vmatpush1.msra.mxu0 %v867
      %891 = vmatprep.subr.mxu0 %v870
      %892 = vmatpush1.msra.mxu0 %v869
      %893 = vmatprep.subr.mxu0 0.0
      %894 = vmatpush1.msra.mxu0 0.0
      %895 = vmatprep.subr.mxu0 0.0
      %896 = vmatpush1.msra.mxu0 0.0
      %897 = vmatprep.subr.mxu0 0.0
      %898 = vmatpush1.msra.mxu0 0.0
      %899 = vmatprep.subr.mxu0 0.0
      %900 = vmatpush1.msra.mxu0 0.0
      %901 = vmatprep.subr.mxu0 0.0
      %902 = vmatpush1.msra.mxu0 0.0
      %903 = vmatprep.subr.mxu0 0.0
      %904 = vmatpush1.msra.mxu0 0.0
      %905 = vmatprep.subr.mxu0 0.0
      %906 = vmatpush1.msra.mxu0 0.0
      %907 = vmatprep.subr.mxu0 0.0
      %908 = vmatpush1.msra.mxu0 0.0
      %909 = vmatprep.subr.mxu0 0.0
      %910 = vmatpush1.msra.mxu0 0.0
      %911 = vmatprep.subr.mxu0 0.0
      %912 = vmatpush1.msra.mxu0 0.0
      %913 = vmatprep.subr.mxu0 0.0
      %914 = vmatpush1.msra.mxu0 0.0
      %915 = vmatprep.subr.mxu0 0.0
      %916 = vmatpush1.msra.mxu0 0.0
      %917 = vmatprep.subr.mxu0 0.0
      %918 = vmatpush1.msra.mxu0 0.0
      %919 = vmatprep.subr.mxu0 0.0
      %920 = vmatpush1.msra.mxu0 0.0
      %921 = vmatprep.subr.mxu0 0.0
      %922 = vmatpush1.msra.mxu0 0.0
      %923 = vmatprep.subr.mxu0 0.0
      %924 = vmatpush1.msra.mxu0 0.0
      %925 = vmatprep.subr.mxu0 0.0
      %926 = vmatpush1.msra.mxu0 0.0
      %927 = vmatprep.subr.mxu0 0.0
      %928 = vmatpush1.msra.mxu0 0.0
      %929 = vmatprep.subr.mxu0 0.0
      %930 = vmatpush1.msra.mxu0 0.0
      %931 = vmatprep.subr.mxu0 0.0
      %932 = vmatpush1.msra.mxu0 0.0
      %933 = vmatprep.subr.mxu0 0.0
      %934 = vmatpush1.msra.mxu0 0.0
      %935 = vmatprep.subr.mxu0 0.0
      %936 = vmatpush1.msra.mxu0 0.0
      %937 = vmatprep.subr.mxu0 0.0
      %938 = vmatpush1.msra.mxu0 0.0
      %939 = vmatprep.mubr.f32.mxu0 0.0
      %940 = vmatmul.mubr.f32.gmra.mrb[0].mxu0 %v873
      %v941 = vpop.f32.mrb[0].mxu0
      %v942 = vadd.f32 0.0, %v941
      %v943 = vpop.f32.mrb[0].mxu0
      %v944 = vadd.f32 0.0, %v943
      %945 = vdwg.mxu0
      %v946 = vsel %vm535, %v942, 0.0
      %v947 = vsel %vm535, %v944, 0.0
      %v948 = vadd.f32 %v946, %v947
      %949 = vadd.xlane.f32.xlu0 %v948
      %v950 = vpop.xlane.xlu0 %949
      %v951 = vrot.slane %v950, 4
      %v952 = vadd.f32 %v950, %v951
      %v953 = vrot.slane %v952, 2
      %v954 = vadd.f32 %v952, %v953
      %v955 = vrot.slane %v954, 1
      %v956 = vadd.f32 %v954, %v955
      %s957 = vtos %v956
      %v958 = vrcp.pop 1024.0
      %s959 = vtos %v958
      %s960 = smul.f32 %s957, %s959
      %v961 = vmul.f32 %v942, %v942
      %v962 = vmul.f32 %v944, %v944
      %v963 = vsel %vm535, %v961, 0.0
      %v964 = vsel %vm535, %v962, 0.0
      %v965 = vadd.f32 %v963, %v964
      %966 = vadd.xlane.f32.xlu0 %v965
      %v967 = vpop.xlane.xlu0 %966
      %v968 = vrot.slane %v967, 4
      %v969 = vadd.f32 %v967, %v968
      %v970 = vrot.slane %v969, 2
      %v971 = vadd.f32 %v969, %v970
      %v972 = vrot.slane %v971, 1
      %v973 = vadd.f32 %v971, %v972
      %s974 = vtos %v973
      %v975 = vrcp.pop 1024.0
      %s976 = vtos %v975
      %s977 = smul.f32 %s974, %s976
      %s978 = smul.f32 %s960, %s960
      %s979 = ssub.f32 %s977, %s978
      %s980 = sadd.f32 %s979, 1e-05
      %v981 = vstv %s980
      %v982 = vrsqrt.pop %v981
      %s983 = vtos %v982
      %v984 = vld [vmem:[%s5] sm:$0xf]
      %v985 = vld [vmem:[%s6] sm:$0xf]
      %v986 = vstv %s960
      %v987 = vsub.f32 %v942, %v986
      %v988 = vsub.f32 %v944, %v986
      %v989 = vstv %s983
      %v990 = vmul.f32 %v989, %v984
      %992 = vset.pattern.permute.xlu0 0
      %993 = vperm.xlu0 %992, %v990
      %v994 = vpop.permute.xlu0 %993
      %v996 = vmul.f32 %v987, %v994
      %v997 = vmul.f32 %v988, %v994
      %999 = vset.pattern.permute.xlu0 0
      %1000 = vperm.xlu0 %999, %v985
      %v1001 = vpop.permute.xlu0 %1000
      %v1003 = vadd.f32 %v996, %v1001
      %v1004 = vadd.f32 %v997, %v1001
      %v1007 = vcombine.low %v1003, %v1004
      %v1009 = vadd.f32 %v321, %v1007
      %v1010 = vmul.f32 %v1009, 0.5
      %v1011 = vmul.f32 %v1009, 0.70710677
      %v1012 = verf.f32.pop %v1011
      %v1013 = vadd.f32 %v1012, 1.0
      %v1014 = vmul.f32 %v1010, %v1013
      %1015 = vst [vmem:[%s278] sm:$0xff] %v1014
      %p1016 = scmp.lt.s32.totalorder %s18, 1
      %s1017 = scalar_select %p1016, %s18, 1
      %s1018 = smul.addr %s1017, 2
      %s1019 = smul.addr %s1018, 4
      %s1020 = scalar_lea.vmem %s7, %s1019
      // Predicated region
      $region53: #{double_conv.1} parent=47 // pred_check
        %p1021 = pneg %p188
      $region54: #{double_conv.1} parent=47 // pred_check_branch
        %1023 = sbr.rel (%p1021) target = $region56
      $region55: #{double_conv.1} parent=47 // pred_region
        _
      $region56: #{double_conv.1} parent=47 // pred_fallthru
        _
    $region48: #{double_conv.1} parent=5 // pred_fallthru
      _
    %p1024 = scmp.le.s32.totalorder 2, %s13
    // Predicated region
    $region57: #{double_conv.1} parent=5 // pred_check
      %p1025 = pneg %p1024
    $region58: #{double_conv.1} parent=5 // pred_check_branch
      %1027 = sbr.rel (%p1025) target = $region60
    $region59: #{double_conv.1} parent=5 // pred_region
      %s1028 = ssub.s32 %s13, 2
      // Predicated region
      $region61: #{double_conv.1} parent=59 // pred_check
        %p1029 = pneg %p194
      $region62: #{double_conv.1} parent=59 // pred_check_branch
        %1031 = sbr.rel (%p1029) target = $region64
      $region63: #{double_conv.1} parent=59 // pred_region
        %p1032 = scmp.lt.s32.totalorder %s19, 1
        %s1033 = scalar_select %p1032, %s19, 1
        %s1034 = smul.addr %s1033, 2
        %s1035 = smul.addr %s1034, 4
        %s1036 = scalar_lea.vmem %s7, %s1035
      $region64: #{double_conv.1} parent=59 // pred_fallthru
        _
    $region60: #{double_conv.1} parent=5 // pred_fallthru
      _
  $region6: #{double_conv.1} parent=0 // loop_footer
    %s17 = sadd.s32 1, %s13
  $region7: #{double_conv.1} parent=0 // loop_footer_branch
    %12 = sbr.rel target = $region3
  $region8: #{double_conv.1} parent=0 // loop_exit
    _

</llo_original>
